<compile_context>
chip_gen: v6e
topology: v6e:2x2x1
jax: 0.10.0
libtpu: 0.0.40
codegen_flags: <defaults>
</compile_context>

<pallas_src>
import jax
import jax.numpy as jnp
from jax.experimental import pallas as pl
from jax.experimental.pallas import tpu as pltpu

EPS = 1e-5
K = 4  # conv kernel size (fixed by the module)

# Down conv (k=4, s=2, p=1) on the space-to-depth input:
#   k - 1 = 2*d + s  ->  tap k reads s2d phase s at flat-lane shift d.
_DOWN_1D = {0: (-1, 1), 1: (0, 0), 2: (0, 1), 3: (1, 0)}

# Transposed conv (k=4, s=2, p=1) output-phase decomposition:  k = p + 1 - 2*d.
_UP_1D = {0: ((0, 1), (-1, 3)), 1: ((1, 0), (0, 2))}
_PHASE_TAPS = tuple(
    tuple((dy, dx, ky, kx)
          for (dy, ky) in _UP_1D[py]
          for (dx, kx) in _UP_1D[px])
    for py in (0, 1) for px in (0, 1))            # phase p = 2*py + px

# The 9 distinct (dy, dx) shifts; boundary-mask row = (dy+1)*3 + (dx+1).
_SHIFTS = tuple((dy, dx) for dy in (-1, 0, 1) for dx in (-1, 0, 1))


def _make_kernel(C_in, inner_nc, outer_nc, n_pack, H1, W1):
    F1 = H1 * W1
    L = n_pack * F1                 # lane extent (packed images)
    G = W1 + 1                      # gutter so every shift stays in range
    inv_n = 1.0 / float(4 * F1)     # 1 / (H*W) per image

    def kernel(x_ref, wd_ref, wu_ref, msk_ref, seg_ref, o_ref, y1g_ref):
        # Finite gutters (their values are always masked to 0 before use, the
        # write only guards against NaN*0).  Unconditional: tiny, and safe
        # when the "parallel" batch axis is sharded across TensorCores.
        zg = jnp.zeros((inner_nc, G), jnp.bfloat16)
        y1g_ref[:, :G] = zg
        y1g_ref[:, G + L:] = zg

        def shifted(ref, row0, nrows, dy, dx):
            # (nrows, L) bf16 slice shifted by (dy, dx), boundary-masked.
            st = G + dy * W1 + dx
            sl = ref[row0:row0 + nrows, st:st + L]
            if (dy, dx) != (0, 0):
                mi = (dy + 1) * 3 + (dx + 1)
                sl = sl * msk_ref[mi:mi + 1, :]
            return sl

        # ---- down conv: in-kernel im2col from the space-to-depth input
        # (16 masked lane-slice shifts), one MXU matmul (bf16 in, f32 acc).
        parts = []
        for ky in range(K):
            dy, sy = _DOWN_1D[ky]
            for kx in range(K):
                dx, sx = _DOWN_1D[kx]
                parts.append(shifted(x_ref, (2 * sy + sx) * C_in, C_in, dy, dx))
        y1 = jnp.dot(wd_ref[...], jnp.concatenate(parts, axis=0),
                     preferred_element_type=jnp.float32)       # (inner, L) f32
        # ReLU + a single bf16 cast into the gutter scratch.
        y1g_ref[:, G:G + L] = jnp.maximum(y1, 0.0).astype(jnp.bfloat16)

        # ---- dedup: 9 masked shifted y1 slices shared by the 4 up phases.
        ysl = {s: shifted(y1g_ref, 0, inner_nc, *s) for s in _SHIFTS}

        # ---- up conv: 4 phase matmuls; un-normalized phases go straight to
        # o_ref, only per-lane sum / sum-of-squares accumulators stay live.
        acc1 = jnp.zeros((outer_nc, L), jnp.float32)
        acc2 = jnp.zeros((outer_nc, L), jnp.float32)
        for p, taps in enumerate(_PHASE_TAPS):
            rhs = jnp.concatenate([ysl[(dy, dx)] for (dy, dx, _, _) in taps],
                                  axis=0)                      # (4*inner, L)
            ph = jnp.dot(wu_ref[p], rhs, preferred_element_type=jnp.float32)
            o_ref[p * outer_nc:(p + 1) * outer_nc, :] = ph
            acc1 = acc1 + ph
            acc2 = acc2 + ph * ph

        # ---- per-image InstanceNorm stats (n_pack images share the lanes).
        mean_map = jnp.zeros((outer_nc, L), jnp.float32)
        inv_map = jnp.zeros((outer_nc, L), jnp.float32)
        for i in range(n_pack):
            seg = seg_ref[i:i + 1, :]                          # (1, L) f32 0/1
            m_i = jnp.sum(acc1 * seg, axis=-1, keepdims=True) * inv_n
            e2_i = jnp.sum(acc2 * seg, axis=-1, keepdims=True) * inv_n
            # TODO(synk): one-pass E[x^2]-E[x]^2 can cancel when |mean|>>std;
            # use a mean-shifted second pass if that regime matters.
            inv_i = jax.lax.rsqrt(e2_i - m_i * m_i + EPS)
            mean_map = mean_map + m_i * seg
            inv_map = inv_map + inv_i * seg

        # ---- normalize in place (short second pass over the resident tile).
        o_ref[...] = ((o_ref[...] - jnp.concatenate([mean_map] * 4, axis=0))
                      * jnp.concatenate([inv_map] * 4, axis=0))

    return kernel


def unet_skip_innermost(x_nchw, w_down, w_up, *, lane_target=128):
    """x_nchw: (B, C_in, H, W); w_down: (inner, C_in, 4, 4) Conv2d weight;
    w_up: (inner, outer, 4, 4) ConvTranspose2d weight.  Returns NCHW output
    cat([x, InstanceNorm(ConvT(ReLU(Conv(LeakyReLU(x, 0.2)))))], 1) in f32."""
    B, C_in, H, W = x_nchw.shape
    inner_nc = w_down.shape[0]
    outer_nc = w_up.shape[1]
    assert H % 2 == 0 and W % 2 == 0
    H1, W1 = H // 2, W // 2
    F1 = H1 * W1

    # pack images along the lane axis until it is >= lane_target (lane-dense
    # stores / MXU columns, amortizes per-grid-step overhead)
    n_pack = min(B, max(1, lane_target // F1))
    while B % n_pack:
        n_pack -= 1
    L = n_pack * F1
    G = W1 + 1
    n_grp = B // n_pack

    xf = x_nchw.astype(jnp.float32)
    x_act = jnp.where(xf >= 0, xf, 0.2 * xf)          # LeakyReLU folded in

    # space-to-depth: (n_grp, 4*C_in, G + n_pack*F1 + G) bf16; channel index
    # (2*sy+sx)*C_in + ci, lane index img*F1 + qy*W1 + qx, zero lane gutters.
    x_s2d = x_act.reshape(B, C_in, H1, 2, W1, 2)
    x_s2d = x_s2d.transpose(0, 3, 5, 1, 2, 4).reshape(B, 4 * C_in, F1)
    x_s2d = x_s2d.reshape(n_grp, n_pack, 4 * C_in, F1).transpose(0, 2, 1, 3)
    x_s2d = x_s2d.reshape(n_grp, 4 * C_in, L)
    x_s2d = jnp.pad(x_s2d, ((0, 0), (0, 0), (G, G))).astype(jnp.bfloat16)

    # weight matrices (channels-in-sublane layout), bf16 MXU operands
    wd_mat = jnp.transpose(w_down, (0, 2, 3, 1)).reshape(inner_nc, K * K * C_in)
    wd_mat = wd_mat.astype(jnp.bfloat16)                       # (inner, 16*C_in)
    wu_all = jnp.stack(
        [jnp.concatenate([jnp.transpose(w_up[:, :, ky, kx])
                          for (_, _, ky, kx) in taps], axis=1)
         for taps in _PHASE_TAPS], axis=0).astype(jnp.bfloat16)  # (4, outer, 4*inner)

    # boundary masks for the 9 shifts (bf16 0/1) + per-image segment masks (f32)
    lane = jnp.arange(L, dtype=jnp.int32)
    qy = (lane % F1) // W1
    qx = lane % W1
    msk = jnp.stack(
        [((qy + dy >= 0) & (qy + dy < H1) & (qx + dx >= 0) & (qx + dx < W1)
          ).astype(jnp.bfloat16) for (dy, dx) in _SHIFTS], axis=0)   # (9, L)
    seg = (lane[None, :] // F1 ==
           jnp.arange(n_pack, dtype=jnp.int32)[:, None]).astype(jnp.float32)

    mm_flops = (2 * inner_nc * (K * K * C_in) * L
                + 4 * 2 * outer_nc * (4 * inner_nc) * L)
    cost = pl.CostEstimate(
        flops=n_grp * mm_flops,
        transcendentals=n_grp * outer_nc * n_pack,
        bytes_accessed=int(2 * x_s2d.size + 2 * wd_mat.size + 2 * wu_all.size
                           + 2 * msk.size + 4 * seg.size
                           + 4 * n_grp * 4 * outer_nc * L))

    ker_out = pl.pallas_call(
        _make_kernel(C_in, inner_nc, outer_nc, n_pack, H1, W1),
        out_shape=jax.ShapeDtypeStruct((n_grp, 4 * outer_nc, L), jnp.float32),
        grid_spec=pltpu.PrefetchScalarGridSpec(
            num_scalar_prefetch=0,
            grid=(n_grp,),
            in_specs=[
                pl.BlockSpec((None, 4 * C_in, L + 2 * G), lambda b: (b, 0, 0)),
                pl.BlockSpec((inner_nc, K * K * C_in), lambda b: (0, 0)),
                pl.BlockSpec((4, outer_nc, 4 * inner_nc), lambda b: (0, 0, 0)),
                pl.BlockSpec((9, L), lambda b: (0, 0)),
                pl.BlockSpec((n_pack, L), lambda b: (0, 0)),
            ],
            out_specs=pl.BlockSpec((None, 4 * outer_nc, L), lambda b: (b, 0, 0)),
            scratch_shapes=[pltpu.VMEM((inner_nc, L + 2 * G), jnp.bfloat16)],
        ),
        compiler_params=pltpu.CompilerParams(
            dimension_semantics=("parallel",),
            vmem_limit_bytes=48 * 1024 * 1024),
        cost_estimate=cost,
    )(x_s2d, wd_mat, wu_all, msk, seg)

    # de-interleave the 4 output phases / packed images back to NCHW
    y2 = ker_out.reshape(n_grp, 2, 2, outer_nc, n_pack, H1, W1)
    y2 = y2.transpose(0, 4, 3, 5, 1, 6, 2).reshape(B, outer_nc, H, W)

    # skip connection: torch.cat([x, model(x)], dim=1)
    return jnp.concatenate([xf, y2], axis=1)


# --------------------------- JAX references ---------------------------------
def _reference_f32(x, w_down, w_up):
    """Pure-f32 reference matching the PyTorch module exactly."""
    dn = ('NCHW', 'OIHW', 'NCHW')
    xa = jnp.where(x >= 0, x, 0.2 * x)
    y1 = jax.lax.conv_general_dilated(xa, w_down, (2, 2), [(1, 1), (1, 1)],
                                      dimension_numbers=dn)
    y1 = jnp.maximum(y1, 0.0)
    wu = jnp.transpose(w_up[:, :, ::-1, ::-1], (1, 0, 2, 3))
    y2 = jax.lax.conv_general_dilated(y1, wu, (1, 1), [(2, 2), (2, 2)],
                                      lhs_dilation=(2, 2), dimension_numbers=dn)
    m = y2.mean(axis=(2, 3), keepdims=True)
    v = jnp.square(y2 - m).mean(axis=(2, 3), keepdims=True)
    return jnp.concatenate([x, (y2 - m) / jnp.sqrt(v + EPS)], axis=1)


def _reference_bf16(x, w_down, w_up):
    """Reference with the kernel's matmul policy (bf16 operands, f32 acc)."""
    dn = ('NCHW', 'OIHW', 'NCHW')
    xa = jnp.where(x >= 0, x, 0.2 * x)
    y1 = jax.lax.conv_general_dilated(
        xa.astype(jnp.bfloat16), w_down.astype(jnp.bfloat16), (2, 2),
        [(1, 1), (1, 1)], dimension_numbers=dn,
        preferred_element_type=jnp.float32)
    y1 = jnp.maximum(y1, 0.0)
    wu = jnp.transpose(w_up[:, :, ::-1, ::-1], (1, 0, 2, 3)).astype(jnp.bfloat16)
    y2 = jax.lax.conv_general_dilated(
        y1.astype(jnp.bfloat16), wu, (1, 1), [(2, 2), (2, 2)],
        lhs_dilation=(2, 2), dimension_numbers=dn,
        preferred_element_type=jnp.float32)
    m = y2.mean(axis=(2, 3), keepdims=True)
    ex2 = (y2 * y2).mean(axis=(2, 3), keepdims=True)
    return jnp.concatenate([x, (y2 - m) * jax.lax.rsqrt(ex2 - m * m + EPS)],
                           axis=1)


if __name__ == "__main__":
    # innermost block: outer_nc=4, inner_nc=8, input_nc defaults to outer_nc
    B, input_nc, H, W = 4, 4, 16, 16
    outer_nc, inner_nc = 4, 8

    key = jax.random.PRNGKey(0)
    k1, k2, k3 = jax.random.split(key, 3)
    w_down = jax.random.normal(k1, (inner_nc, input_nc, K, K), jnp.float32) * 0.1
    w_up = jax.random.normal(k2, (inner_nc, outer_nc, K, K), jnp.float32) * 0.1
    x = jax.random.normal(k3, (B, input_nc, H, W), jnp.float32)

    out = jax.jit(unet_skip_innermost)(x, w_down, w_up)
    out = jax.block_until_ready(out)
    assert out.shape == (B, input_nc + outer_nc, H, W), out.shape

    # algorithmic check vs. a reference using the same bf16-operand policy
    err_b = float(jnp.max(jnp.abs(out - _reference_bf16(x, w_down, w_up))))
    assert err_b < 1e-2, err_b
    # semantic check vs. the pure-f32 PyTorch-equivalent reference
    err_f = float(jnp.max(jnp.abs(out - _reference_f32(x, w_down, w_up))))
    assert err_f < 6e-2, err_f

    print("KERNEL_OK")
</pallas_src>

<mosaic_0001>
module attributes {stable_mosaic.version = 11 : i64} {
  func.func @kernel(%arg0: i32, %arg1: memref<1x16x146xbf16, #tpu.memory_space<vmem>>, %arg2: memref<8x64xbf16, #tpu.memory_space<vmem>>, %arg3: memref<4x4x32xbf16, #tpu.memory_space<vmem>>, %arg4: memref<9x128xbf16, #tpu.memory_space<vmem>>, %arg5: memref<2x128xf32, #tpu.memory_space<vmem>>, %arg6: memref<1x16x128xf32, #tpu.memory_space<vmem>>, %arg7: memref<8x146xbf16, #tpu.memory_space<vmem>>) attributes {dimension_semantics = [#tpu.dimension_semantics<parallel>], iteration_bounds = array<i64: 2>, scalar_prefetch = 0 : i64, scratch_operands = 1 : i64, tpu.core_type = #tpu.core_type<tc>, window_params = [{transform_indices = @transform_0, window_bounds = array<i64: 1, 16, 146>}, {pipeline_mode = #tpu.pipeline_mode<synchronous>, transform_indices = @transform_1, window_bounds = array<i64: 8, 64>}, {pipeline_mode = #tpu.pipeline_mode<synchronous>, transform_indices = @transform_2, window_bounds = array<i64: 4, 4, 32>}, {pipeline_mode = #tpu.pipeline_mode<synchronous>, transform_indices = @transform_3, window_bounds = array<i64: 9, 128>}, {pipeline_mode = #tpu.pipeline_mode<synchronous>, transform_indices = @transform_4, window_bounds = array<i64: 2, 128>}, {transform_indices = @transform_5, window_bounds = array<i64: 1, 16, 128>}]} {
    %cst = arith.constant 0.000000e+00 : bf16
    %0 = vector.broadcast %cst : bf16 to vector<8x9xbf16>
    %c0 = arith.constant 0 : index
    %c0_0 = arith.constant 0 : index
    %1 = vector.load %arg7[%c0, %c0_0] : memref<8x146xbf16, #tpu.memory_space<vmem>>, vector<8x9xbf16>
    tpu.vector_store %arg7[%c0, %c0_0], %0 {strides = array<i32>} : memref<8x146xbf16, #tpu.memory_space<vmem>>, vector<8x9xbf16>,
    %c0_1 = arith.constant 0 : index
    %c137 = arith.constant 137 : index
    %2 = vector.load %arg7[%c0_1, %c137] : memref<8x146xbf16, #tpu.memory_space<vmem>>, vector<8x9xbf16>
    tpu.vector_store %arg7[%c0_1, %c137], %0 {strides = array<i32>} : memref<8x146xbf16, #tpu.memory_space<vmem>>, vector<8x9xbf16>,
    %c0_2 = arith.constant 0 : index
    %c12 = arith.constant 12 : index
    %c0_3 = arith.constant 0 : index
    %3 = vector.load %arg1[%c0_2, %c12, %c0_3] : memref<1x16x146xbf16, #tpu.memory_space<vmem>>, vector<1x4x128xbf16>
    %4 = vector.shape_cast %3 : vector<1x4x128xbf16> to vector<4x128xbf16>
    %c0_4 = arith.constant 0 : index
    %c0_5 = arith.constant 0 : index
    %5 = vector.load %arg4[%c0_4, %c0_5] : memref<9x128xbf16, #tpu.memory_space<vmem>>, vector<1x128xbf16>
    %6 = vector.broadcast %5 : vector<1x128xbf16> to vector<4x128xbf16>
    %7 = arith.mulf %4, %6 : vector<4x128xbf16>
    %c0_6 = arith.constant 0 : index
    %c8 = arith.constant 8 : index
    %c1 = arith.constant 1 : index
    %8 = vector.load %arg1[%c0_6, %c8, %c1] : memref<1x16x146xbf16, #tpu.memory_space<vmem>>, vector<1x4x128xbf16>
    %9 = vector.shape_cast %8 : vector<1x4x128xbf16> to vector<4x128xbf16>
    %c1_7 = arith.constant 1 : index
    %c0_8 = arith.constant 0 : index
    %10 = vector.load %arg4[%c1_7, %c0_8] : memref<9x128xbf16, #tpu.memory_space<vmem>>, vector<1x128xbf16>
    %11 = vector.broadcast %10 : vector<1x128xbf16> to vector<4x128xbf16>
    %12 = arith.mulf %9, %11 : vector<4x128xbf16>
    %c0_9 = arith.constant 0 : index
    %c12_10 = arith.constant 12 : index
    %c1_11 = arith.constant 1 : index
    %13 = vector.load %arg1[%c0_9, %c12_10, %c1_11] : memref<1x16x146xbf16, #tpu.memory_space<vmem>>, vector<1x4x128xbf16>
    %14 = vector.shape_cast %13 : vector<1x4x128xbf16> to vector<4x128xbf16>
    %c1_12 = arith.constant 1 : index
    %c0_13 = arith.constant 0 : index
    %15 = vector.load %arg4[%c1_12, %c0_13] : memref<9x128xbf16, #tpu.memory_space<vmem>>, vector<1x128xbf16>
    %16 = vector.broadcast %15 : vector<1x128xbf16> to vector<4x128xbf16>
    %17 = arith.mulf %14, %16 : vector<4x128xbf16>
    %c0_14 = arith.constant 0 : index
    %c8_15 = arith.constant 8 : index
    %c2 = arith.constant 2 : index
    %18 = vector.load %arg1[%c0_14, %c8_15, %c2] : memref<1x16x146xbf16, #tpu.memory_space<vmem>>, vector<1x4x128xbf16>
    %19 = vector.shape_cast %18 : vector<1x4x128xbf16> to vector<4x128xbf16>
    %c2_16 = arith.constant 2 : index
    %c0_17 = arith.constant 0 : index
    %20 = vector.load %arg4[%c2_16, %c0_17] : memref<9x128xbf16, #tpu.memory_space<vmem>>, vector<1x128xbf16>
    %21 = vector.broadcast %20 : vector<1x128xbf16> to vector<4x128xbf16>
    %22 = arith.mulf %19, %21 : vector<4x128xbf16>
    %c0_18 = arith.constant 0 : index
    %c4 = arith.constant 4 : index
    %c8_19 = arith.constant 8 : index
    %23 = vector.load %arg1[%c0_18, %c4, %c8_19] : memref<1x16x146xbf16, #tpu.memory_space<vmem>>, vector<1x4x128xbf16>
    %24 = vector.shape_cast %23 : vector<1x4x128xbf16> to vector<4x128xbf16>
    %c3 = arith.constant 3 : index
    %c0_20 = arith.constant 0 : index
    %25 = vector.load %arg4[%c3, %c0_20] : memref<9x128xbf16, #tpu.memory_space<vmem>>, vector<1x128xbf16>
    %26 = vector.broadcast %25 : vector<1x128xbf16> to vector<4x128xbf16>
    %27 = arith.mulf %24, %26 : vector<4x128xbf16>
    %c0_21 = arith.constant 0 : index
    %c0_22 = arith.constant 0 : index
    %c9 = arith.constant 9 : index
    %28 = vector.load %arg1[%c0_21, %c0_22, %c9] : memref<1x16x146xbf16, #tpu.memory_space<vmem>>, vector<1x4x128xbf16>
    %29 = vector.shape_cast %28 : vector<1x4x128xbf16> to vector<4x128xbf16>
    %c0_23 = arith.constant 0 : index
    %c4_24 = arith.constant 4 : index
    %c9_25 = arith.constant 9 : index
    %30 = vector.load %arg1[%c0_23, %c4_24, %c9_25] : memref<1x16x146xbf16, #tpu.memory_space<vmem>>, vector<1x4x128xbf16>
    %31 = vector.shape_cast %30 : vector<1x4x128xbf16> to vector<4x128xbf16>
    %c0_26 = arith.constant 0 : index
    %c0_27 = arith.constant 0 : index
    %c10 = arith.constant 10 : index
    %32 = vector.load %arg1[%c0_26, %c0_27, %c10] : memref<1x16x146xbf16, #tpu.memory_space<vmem>>, vector<1x4x128xbf16>
    %33 = vector.shape_cast %32 : vector<1x4x128xbf16> to vector<4x128xbf16>
    %c5 = arith.constant 5 : index
    %c0_28 = arith.constant 0 : index
    %34 = vector.load %arg4[%c5, %c0_28] : memref<9x128xbf16, #tpu.memory_space<vmem>>, vector<1x128xbf16>
    %35 = vector.broadcast %34 : vector<1x128xbf16> to vector<4x128xbf16>
    %36 = arith.mulf %33, %35 : vector<4x128xbf16>
    %c0_29 = arith.constant 0 : index
    %c12_30 = arith.constant 12 : index
    %c8_31 = arith.constant 8 : index
    %37 = vector.load %arg1[%c0_29, %c12_30, %c8_31] : memref<1x16x146xbf16, #tpu.memory_space<vmem>>, vector<1x4x128xbf16>
    %38 = vector.shape_cast %37 : vector<1x4x128xbf16> to vector<4x128xbf16>
    %c3_32 = arith.constant 3 : index
    %c0_33 = arith.constant 0 : index
    %39 = vector.load %arg4[%c3_32, %c0_33] : memref<9x128xbf16, #tpu.memory_space<vmem>>, vector<1x128xbf16>
    %40 = vector.broadcast %39 : vector<1x128xbf16> to vector<4x128xbf16>
    %41 = arith.mulf %38, %40 : vector<4x128xbf16>
    %c0_34 = arith.constant 0 : index
    %c8_35 = arith.constant 8 : index
    %c9_36 = arith.constant 9 : index
    %42 = vector.load %arg1[%c0_34, %c8_35, %c9_36] : memref<1x16x146xbf16, #tpu.memory_space<vmem>>, vector<1x4x128xbf16>
    %43 = vector.shape_cast %42 : vector<1x4x128xbf16> to vector<4x128xbf16>
    %c0_37 = arith.constant 0 : index
    %c12_38 = arith.constant 12 : index
    %c9_39 = arith.constant 9 : index
    %44 = vector.load %arg1[%c0_37, %c12_38, %c9_39] : memref<1x16x146xbf16, #tpu.memory_space<vmem>>, vector<1x4x128xbf16>
    %45 = vector.shape_cast %44 : vector<1x4x128xbf16> to vector<4x128xbf16>
    %c0_40 = arith.constant 0 : index
    %c8_41 = arith.constant 8 : index
    %c10_42 = arith.constant 10 : index
    %46 = vector.load %arg1[%c0_40, %c8_41, %c10_42] : memref<1x16x146xbf16, #tpu.memory_space<vmem>>, vector<1x4x128xbf16>
    %47 = vector.shape_cast %46 : vector<1x4x128xbf16> to vector<4x128xbf16>
    %c5_43 = arith.constant 5 : index
    %c0_44 = arith.constant 0 : index
    %48 = vector.load %arg4[%c5_43, %c0_44] : memref<9x128xbf16, #tpu.memory_space<vmem>>, vector<1x128xbf16>
    %49 = vector.broadcast %48 : vector<1x128xbf16> to vector<4x128xbf16>
    %50 = arith.mulf %47, %49 : vector<4x128xbf16>
    %c0_45 = arith.constant 0 : index
    %c4_46 = arith.constant 4 : index
    %c16 = arith.constant 16 : index
    %51 = vector.load %arg1[%c0_45, %c4_46, %c16] : memref<1x16x146xbf16, #tpu.memory_space<vmem>>, vector<1x4x128xbf16>
    %52 = vector.shape_cast %51 : vector<1x4x128xbf16> to vector<4x128xbf16>
    %c6 = arith.constant 6 : index
    %c0_47 = arith.constant 0 : index
    %53 = vector.load %arg4[%c6, %c0_47] : memref<9x128xbf16, #tpu.memory_space<vmem>>, vector<1x128xbf16>
    %54 = vector.broadcast %53 : vector<1x128xbf16> to vector<4x128xbf16>
    %55 = arith.mulf %52, %54 : vector<4x128xbf16>
    %c0_48 = arith.constant 0 : index
    %c0_49 = arith.constant 0 : index
    %c17 = arith.constant 17 : index
    %56 = vector.load %arg1[%c0_48, %c0_49, %c17] : memref<1x16x146xbf16, #tpu.memory_space<vmem>>, vector<1x4x128xbf16>
    %57 = vector.shape_cast %56 : vector<1x4x128xbf16> to vector<4x128xbf16>
    %c7 = arith.constant 7 : index
    %c0_50 = arith.constant 0 : index
    %58 = vector.load %arg4[%c7, %c0_50] : memref<9x128xbf16, #tpu.memory_space<vmem>>, vector<1x128xbf16>
    %59 = vector.broadcast %58 : vector<1x128xbf16> to vector<4x128xbf16>
    %60 = arith.mulf %57, %59 : vector<4x128xbf16>
    %c0_51 = arith.constant 0 : index
    %c4_52 = arith.constant 4 : index
    %c17_53 = arith.constant 17 : index
    %61 = vector.load %arg1[%c0_51, %c4_52, %c17_53] : memref<1x16x146xbf16, #tpu.memory_space<vmem>>, vector<1x4x128xbf16>
    %62 = vector.shape_cast %61 : vector<1x4x128xbf16> to vector<4x128xbf16>
    %c7_54 = arith.constant 7 : index
    %c0_55 = arith.constant 0 : index
    %63 = vector.load %arg4[%c7_54, %c0_55] : memref<9x128xbf16, #tpu.memory_space<vmem>>, vector<1x128xbf16>
    %64 = vector.broadcast %63 : vector<1x128xbf16> to vector<4x128xbf16>
    %65 = arith.mulf %62, %64 : vector<4x128xbf16>
    %c0_56 = arith.constant 0 : index
    %c0_57 = arith.constant 0 : index
    %c18 = arith.constant 18 : index
    %66 = vector.load %arg1[%c0_56, %c0_57, %c18] : memref<1x16x146xbf16, #tpu.memory_space<vmem>>, vector<1x4x128xbf16>
    %67 = vector.shape_cast %66 : vector<1x4x128xbf16> to vector<4x128xbf16>
    %c8_58 = arith.constant 8 : index
    %c0_59 = arith.constant 0 : index
    %68 = vector.load %arg4[%c8_58, %c0_59] : memref<9x128xbf16, #tpu.memory_space<vmem>>, vector<1x128xbf16>
    %69 = vector.broadcast %68 : vector<1x128xbf16> to vector<4x128xbf16>
    %70 = arith.mulf %67, %69 : vector<4x128xbf16>
    %c0_60 = arith.constant 0 : index
    %c0_61 = arith.constant 0 : index
    %71 = vector.load %arg2[%c0_60, %c0_61] : memref<8x64xbf16, #tpu.memory_space<vmem>>, vector<8x64xbf16>
    %72 = tpu.concatenate %7, %12, %17, %22, %27, %29, %31, %36, %41, %43, %45, %50, %55, %60, %65, %70 in 0 : vector<4x128xbf16>, vector<4x128xbf16>, vector<4x128xbf16>, vector<4x128xbf16>, vector<4x128xbf16>, vector<4x128xbf16>, vector<4x128xbf16>, vector<4x128xbf16>, vector<4x128xbf16>, vector<4x128xbf16>, vector<4x128xbf16>, vector<4x128xbf16>, vector<4x128xbf16>, vector<4x128xbf16>, vector<4x128xbf16>, vector<4x128xbf16> -> vector<64x128xbf16>
    %cst_62 = arith.constant dense<0.000000e+00> : vector<8x128xf32>
    %73 = tpu.matmul %71, %72, %cst_62 {dimension_numbers = #tpu.dot_dimension_numbers<[1], [0], [0], [1], [0, 0, 1, 1], [], []>} : vector<8x64xbf16>, vector<64x128xbf16>, vector<8x128xf32> -> vector<8x128xf32>
    %cst_63 = arith.constant 0.000000e+00 : f32
    %74 = vector.broadcast %cst_63 : f32 to vector<8x128xf32>
    %75 = arith.maximumf %73, %74 : vector<8x128xf32>
    %76 = arith.truncf %75 : vector<8x128xf32> to vector<8x128xbf16>
    %c0_64 = arith.constant 0 : index
    %c9_65 = arith.constant 9 : index
    %77 = vector.load %arg7[%c0_64, %c9_65] : memref<8x146xbf16, #tpu.memory_space<vmem>>, vector<8x128xbf16>
    tpu.vector_store %arg7[%c0_64, %c9_65], %76 {strides = array<i32>} : memref<8x146xbf16, #tpu.memory_space<vmem>>, vector<8x128xbf16>,
    %c0_66 = arith.constant 0 : index
    %c0_67 = arith.constant 0 : index
    %78 = vector.load %arg7[%c0_66, %c0_67] : memref<8x146xbf16, #tpu.memory_space<vmem>>, vector<8x128xbf16>
    %c0_68 = arith.constant 0 : index
    %c0_69 = arith.constant 0 : index
    %79 = vector.load %arg4[%c0_68, %c0_69] : memref<9x128xbf16, #tpu.memory_space<vmem>>, vector<1x128xbf16>
    %80 = vector.broadcast %79 : vector<1x128xbf16> to vector<8x128xbf16>
    %81 = arith.mulf %78, %80 : vector<8x128xbf16>
    %c0_70 = arith.constant 0 : index
    %c1_71 = arith.constant 1 : index
    %82 = vector.load %arg7[%c0_70, %c1_71] : memref<8x146xbf16, #tpu.memory_space<vmem>>, vector<8x128xbf16>
    %c1_72 = arith.constant 1 : index
    %c0_73 = arith.constant 0 : index
    %83 = vector.load %arg4[%c1_72, %c0_73] : memref<9x128xbf16, #tpu.memory_space<vmem>>, vector<1x128xbf16>
    %84 = vector.broadcast %83 : vector<1x128xbf16> to vector<8x128xbf16>
    %85 = arith.mulf %82, %84 : vector<8x128xbf16>
    %c0_74 = arith.constant 0 : index
    %c2_75 = arith.constant 2 : index
    %86 = vector.load %arg7[%c0_74, %c2_75] : memref<8x146xbf16, #tpu.memory_space<vmem>>, vector<8x128xbf16>
    %c2_76 = arith.constant 2 : index
    %c0_77 = arith.constant 0 : index
    %87 = vector.load %arg4[%c2_76, %c0_77] : memref<9x128xbf16, #tpu.memory_space<vmem>>, vector<1x128xbf16>
    %88 = vector.broadcast %87 : vector<1x128xbf16> to vector<8x128xbf16>
    %89 = arith.mulf %86, %88 : vector<8x128xbf16>
    %c0_78 = arith.constant 0 : index
    %c8_79 = arith.constant 8 : index
    %90 = vector.load %arg7[%c0_78, %c8_79] : memref<8x146xbf16, #tpu.memory_space<vmem>>, vector<8x128xbf16>
    %c3_80 = arith.constant 3 : index
    %c0_81 = arith.constant 0 : index
    %91 = vector.load %arg4[%c3_80, %c0_81] : memref<9x128xbf16, #tpu.memory_space<vmem>>, vector<1x128xbf16>
    %92 = vector.broadcast %91 : vector<1x128xbf16> to vector<8x128xbf16>
    %93 = arith.mulf %90, %92 : vector<8x128xbf16>
    %c0_82 = arith.constant 0 : index
    %c9_83 = arith.constant 9 : index
    %94 = vector.load %arg7[%c0_82, %c9_83] : memref<8x146xbf16, #tpu.memory_space<vmem>>, vector<8x128xbf16>
    %c0_84 = arith.constant 0 : index
    %c10_85 = arith.constant 10 : index
    %95 = vector.load %arg7[%c0_84, %c10_85] : memref<8x146xbf16, #tpu.memory_space<vmem>>, vector<8x128xbf16>
    %c5_86 = arith.constant 5 : index
    %c0_87 = arith.constant 0 : index
    %96 = vector.load %arg4[%c5_86, %c0_87] : memref<9x128xbf16, #tpu.memory_space<vmem>>, vector<1x128xbf16>
    %97 = vector.broadcast %96 : vector<1x128xbf16> to vector<8x128xbf16>
    %98 = arith.mulf %95, %97 : vector<8x128xbf16>
    %c0_88 = arith.constant 0 : index
    %c16_89 = arith.constant 16 : index
    %99 = vector.load %arg7[%c0_88, %c16_89] : memref<8x146xbf16, #tpu.memory_space<vmem>>, vector<8x128xbf16>
    %c6_90 = arith.constant 6 : index
    %c0_91 = arith.constant 0 : index
    %100 = vector.load %arg4[%c6_90, %c0_91] : memref<9x128xbf16, #tpu.memory_space<vmem>>, vector<1x128xbf16>
    %101 = vector.broadcast %100 : vector<1x128xbf16> to vector<8x128xbf16>
    %102 = arith.mulf %99, %101 : vector<8x128xbf16>
    %c0_92 = arith.constant 0 : index
    %c17_93 = arith.constant 17 : index
    %103 = vector.load %arg7[%c0_92, %c17_93] : memref<8x146xbf16, #tpu.memory_space<vmem>>, vector<8x128xbf16>
    %c7_94 = arith.constant 7 : index
    %c0_95 = arith.constant 0 : index
    %104 = vector.load %arg4[%c7_94, %c0_95] : memref<9x128xbf16, #tpu.memory_space<vmem>>, vector<1x128xbf16>
    %105 = vector.broadcast %104 : vector<1x128xbf16> to vector<8x128xbf16>
    %106 = arith.mulf %103, %105 : vector<8x128xbf16>
    %c0_96 = arith.constant 0 : index
    %c18_97 = arith.constant 18 : index
    %107 = vector.load %arg7[%c0_96, %c18_97] : memref<8x146xbf16, #tpu.memory_space<vmem>>, vector<8x128xbf16>
    %c8_98 = arith.constant 8 : index
    %c0_99 = arith.constant 0 : index
    %108 = vector.load %arg4[%c8_98, %c0_99] : memref<9x128xbf16, #tpu.memory_space<vmem>>, vector<1x128xbf16>
    %109 = vector.broadcast %108 : vector<1x128xbf16> to vector<8x128xbf16>
    %110 = arith.mulf %107, %109 : vector<8x128xbf16>
    %cst_100 = arith.constant 0.000000e+00 : f32
    %111 = vector.broadcast %cst_100 : f32 to vector<4x128xf32>
    %cst_101 = arith.constant 0.000000e+00 : f32
    %112 = vector.broadcast %cst_101 : f32 to vector<4x128xf32>
    %113 = tpu.concatenate %94, %93, %85, %81 in 0 : vector<8x128xbf16>, vector<8x128xbf16>, vector<8x128xbf16>, vector<8x128xbf16> -> vector<32x128xbf16>
    %c0_102 = arith.constant 0 : index
    %c0_103 = arith.constant 0 : index
    %c0_104 = arith.constant 0 : index
    %114 = vector.load %arg3[%c0_102, %c0_103, %c0_104] : memref<4x4x32xbf16, #tpu.memory_space<vmem>>, vector<1x4x32xbf16>
    %115 = vector.shape_cast %114 : vector<1x4x32xbf16> to vector<4x32xbf16>
    %cst_105 = arith.constant dense<0.000000e+00> : vector<4x128xf32>
    %116 = tpu.matmul %115, %113, %cst_105 {dimension_numbers = #tpu.dot_dimension_numbers<[1], [0], [0], [1], [0, 0, 1, 1], [], []>} : vector<4x32xbf16>, vector<32x128xbf16>, vector<4x128xf32> -> vector<4x128xf32>
    %c0_106 = arith.constant 0 : index
    %c0_107 = arith.constant 0 : index
    %c0_108 = arith.constant 0 : index
    %117 = vector.load %arg6[%c0_106, %c0_107, %c0_108] : memref<1x16x128xf32, #tpu.memory_space<vmem>>, vector<1x4x128xf32>
    %118 = vector.shape_cast %117 : vector<1x4x128xf32> to vector<4x128xf32>
    %119 = vector.shape_cast %116 : vector<4x128xf32> to vector<1x4x128xf32>
    tpu.vector_store %arg6[%c0_106, %c0_107, %c0_108], %119 {strides = array<i32>} : memref<1x16x128xf32, #tpu.memory_space<vmem>>, vector<1x4x128xf32>,
    %120 = arith.addf %111, %116 : vector<4x128xf32>
    %121 = arith.mulf %116, %116 : vector<4x128xf32>
    %122 = arith.addf %112, %121 : vector<4x128xf32>
    %123 = tpu.concatenate %98, %94, %89, %85 in 0 : vector<8x128xbf16>, vector<8x128xbf16>, vector<8x128xbf16>, vector<8x128xbf16> -> vector<32x128xbf16>
    %c1_109 = arith.constant 1 : index
    %c0_110 = arith.constant 0 : index
    %c0_111 = arith.constant 0 : index
    %124 = vector.load %arg3[%c1_109, %c0_110, %c0_111] : memref<4x4x32xbf16, #tpu.memory_space<vmem>>, vector<1x4x32xbf16>
    %125 = vector.shape_cast %124 : vector<1x4x32xbf16> to vector<4x32xbf16>
    %cst_112 = arith.constant dense<0.000000e+00> : vector<4x128xf32>
    %126 = tpu.matmul %125, %123, %cst_112 {dimension_numbers = #tpu.dot_dimension_numbers<[1], [0], [0], [1], [0, 0, 1, 1], [], []>} : vector<4x32xbf16>, vector<32x128xbf16>, vector<4x128xf32> -> vector<4x128xf32>
    %c0_113 = arith.constant 0 : index
    %c4_114 = arith.constant 4 : index
    %c0_115 = arith.constant 0 : index
    %127 = vector.load %arg6[%c0_113, %c4_114, %c0_115] : memref<1x16x128xf32, #tpu.memory_space<vmem>>, vector<1x4x128xf32>
    %128 = vector.shape_cast %127 : vector<1x4x128xf32> to vector<4x128xf32>
    %129 = vector.shape_cast %126 : vector<4x128xf32> to vector<1x4x128xf32>
    tpu.vector_store %arg6[%c0_113, %c4_114, %c0_115], %129 {strides = array<i32>} : memref<1x16x128xf32, #tpu.memory_space<vmem>>, vector<1x4x128xf32>,
    %130 = arith.addf %120, %126 : vector<4x128xf32>
    %131 = arith.mulf %126, %126 : vector<4x128xf32>
    %132 = arith.addf %122, %131 : vector<4x128xf32>
    %133 = tpu.concatenate %106, %102, %94, %93 in 0 : vector<8x128xbf16>, vector<8x128xbf16>, vector<8x128xbf16>, vector<8x128xbf16> -> vector<32x128xbf16>
    %c2_116 = arith.constant 2 : index
    %c0_117 = arith.constant 0 : index
    %c0_118 = arith.constant 0 : index
    %134 = vector.load %arg3[%c2_116, %c0_117, %c0_118] : memref<4x4x32xbf16, #tpu.memory_space<vmem>>, vector<1x4x32xbf16>
    %135 = vector.shape_cast %134 : vector<1x4x32xbf16> to vector<4x32xbf16>
    %cst_119 = arith.constant dense<0.000000e+00> : vector<4x128xf32>
    %136 = tpu.matmul %135, %133, %cst_119 {dimension_numbers = #tpu.dot_dimension_numbers<[1], [0], [0], [1], [0, 0, 1, 1], [], []>} : vector<4x32xbf16>, vector<32x128xbf16>, vector<4x128xf32> -> vector<4x128xf32>
    %c0_120 = arith.constant 0 : index
    %c8_121 = arith.constant 8 : index
    %c0_122 = arith.constant 0 : index
    %137 = vector.load %arg6[%c0_120, %c8_121, %c0_122] : memref<1x16x128xf32, #tpu.memory_space<vmem>>, vector<1x4x128xf32>
    %138 = vector.shape_cast %137 : vector<1x4x128xf32> to vector<4x128xf32>
    %139 = vector.shape_cast %136 : vector<4x128xf32> to vector<1x4x128xf32>
    tpu.vector_store %arg6[%c0_120, %c8_121, %c0_122], %139 {strides = array<i32>} : memref<1x16x128xf32, #tpu.memory_space<vmem>>, vector<1x4x128xf32>,
    %140 = arith.addf %130, %136 : vector<4x128xf32>
    %141 = arith.mulf %136, %136 : vector<4x128xf32>
    %142 = arith.addf %132, %141 : vector<4x128xf32>
    %143 = tpu.concatenate %110, %106, %98, %94 in 0 : vector<8x128xbf16>, vector<8x128xbf16>, vector<8x128xbf16>, vector<8x128xbf16> -> vector<32x128xbf16>
    %c3_123 = arith.constant 3 : index
    %c0_124 = arith.constant 0 : index
    %c0_125 = arith.constant 0 : index
    %144 = vector.load %arg3[%c3_123, %c0_124, %c0_125] : memref<4x4x32xbf16, #tpu.memory_space<vmem>>, vector<1x4x32xbf16>
    %145 = vector.shape_cast %144 : vector<1x4x32xbf16> to vector<4x32xbf16>
    %cst_126 = arith.constant dense<0.000000e+00> : vector<4x128xf32>
    %146 = tpu.matmul %145, %143, %cst_126 {dimension_numbers = #tpu.dot_dimension_numbers<[1], [0], [0], [1], [0, 0, 1, 1], [], []>} : vector<4x32xbf16>, vector<32x128xbf16>, vector<4x128xf32> -> vector<4x128xf32>
    %c0_127 = arith.constant 0 : index
    %c12_128 = arith.constant 12 : index
    %c0_129 = arith.constant 0 : index
    %147 = vector.load %arg6[%c0_127, %c12_128, %c0_129] : memref<1x16x128xf32, #tpu.memory_space<vmem>>, vector<1x4x128xf32>
    %148 = vector.shape_cast %147 : vector<1x4x128xf32> to vector<4x128xf32>
    %149 = vector.shape_cast %146 : vector<4x128xf32> to vector<1x4x128xf32>
    tpu.vector_store %arg6[%c0_127, %c12_128, %c0_129], %149 {strides = array<i32>} : memref<1x16x128xf32, #tpu.memory_space<vmem>>, vector<1x4x128xf32>,
    %150 = arith.addf %140, %146 : vector<4x128xf32>
    %151 = arith.mulf %146, %146 : vector<4x128xf32>
    %152 = arith.addf %142, %151 : vector<4x128xf32>
    %cst_130 = arith.constant 0.000000e+00 : f32
    %153 = vector.broadcast %cst_130 : f32 to vector<4x128xf32>
    %cst_131 = arith.constant 0.000000e+00 : f32
    %154 = vector.broadcast %cst_131 : f32 to vector<4x128xf32>
    %c0_132 = arith.constant 0 : index
    %c0_133 = arith.constant 0 : index
    %155 = vector.load %arg5[%c0_132, %c0_133] : memref<2x128xf32, #tpu.memory_space<vmem>>, vector<1x128xf32>
    %156 = vector.broadcast %155 : vector<1x128xf32> to vector<4x128xf32>
    %157 = arith.mulf %150, %156 : vector<4x128xf32>
    %cst_134 = arith.constant dense<0.000000e+00> : vector<4xf32>
    %158 = vector.multi_reduction <add>, %157, %cst_134 [1] : vector<4x128xf32> to vector<4xf32>
    %159 = vector.shape_cast %158 : vector<4xf32> to vector<4x1xf32>
    %cst_135 = arith.constant 3.906250e-03 : f32
    %160 = vector.broadcast %cst_135 : f32 to vector<4x1xf32>
    %161 = arith.mulf %159, %160 : vector<4x1xf32>
    %162 = vector.broadcast %155 : vector<1x128xf32> to vector<4x128xf32>
    %163 = arith.mulf %152, %162 : vector<4x128xf32>
    %cst_136 = arith.constant dense<0.000000e+00> : vector<4xf32>
    %164 = vector.multi_reduction <add>, %163, %cst_136 [1] : vector<4x128xf32> to vector<4xf32>
    %165 = vector.shape_cast %164 : vector<4xf32> to vector<4x1xf32>
    %cst_137 = arith.constant 3.906250e-03 : f32
    %166 = vector.broadcast %cst_137 : f32 to vector<4x1xf32>
    %167 = arith.mulf %165, %166 : vector<4x1xf32>
    %168 = arith.mulf %161, %161 : vector<4x1xf32>
    %169 = arith.subf %167, %168 : vector<4x1xf32>
    %cst_138 = arith.constant 9.99999974E-6 : f32
    %170 = vector.broadcast %cst_138 : f32 to vector<4x1xf32>
    %171 = arith.addf %169, %170 : vector<4x1xf32>
    %172 = math.rsqrt %171 : vector<4x1xf32>
    %173 = vector.broadcast %161 : vector<4x1xf32> to vector<4x128xf32>
    %174 = vector.broadcast %155 : vector<1x128xf32> to vector<4x128xf32>
    %175 = arith.mulf %173, %174 : vector<4x128xf32>
    %176 = arith.addf %153, %175 : vector<4x128xf32>
    %177 = vector.broadcast %172 : vector<4x1xf32> to vector<4x128xf32>
    %178 = vector.broadcast %155 : vector<1x128xf32> to vector<4x128xf32>
    %179 = arith.mulf %177, %178 : vector<4x128xf32>
    %180 = arith.addf %154, %179 : vector<4x128xf32>
    %c1_139 = arith.constant 1 : index
    %c0_140 = arith.constant 0 : index
    %181 = vector.load %arg5[%c1_139, %c0_140] : memref<2x128xf32, #tpu.memory_space<vmem>>, vector<1x128xf32>
    %182 = vector.broadcast %181 : vector<1x128xf32> to vector<4x128xf32>
    %183 = arith.mulf %150, %182 : vector<4x128xf32>
    %cst_141 = arith.constant dense<0.000000e+00> : vector<4xf32>
    %184 = vector.multi_reduction <add>, %183, %cst_141 [1] : vector<4x128xf32> to vector<4xf32>
    %185 = vector.shape_cast %184 : vector<4xf32> to vector<4x1xf32>
    %cst_142 = arith.constant 3.906250e-03 : f32
    %186 = vector.broadcast %cst_142 : f32 to vector<4x1xf32>
    %187 = arith.mulf %185, %186 : vector<4x1xf32>
    %188 = vector.broadcast %181 : vector<1x128xf32> to vector<4x128xf32>
    %189 = arith.mulf %152, %188 : vector<4x128xf32>
    %cst_143 = arith.constant dense<0.000000e+00> : vector<4xf32>
    %190 = vector.multi_reduction <add>, %189, %cst_143 [1] : vector<4x128xf32> to vector<4xf32>
    %191 = vector.shape_cast %190 : vector<4xf32> to vector<4x1xf32>
    %cst_144 = arith.constant 3.906250e-03 : f32
    %192 = vector.broadcast %cst_144 : f32 to vector<4x1xf32>
    %193 = arith.mulf %191, %192 : vector<4x1xf32>
    %194 = arith.mulf %187, %187 : vector<4x1xf32>
    %195 = arith.subf %193, %194 : vector<4x1xf32>
    %cst_145 = arith.constant 9.99999974E-6 : f32
    %196 = vector.broadcast %cst_145 : f32 to vector<4x1xf32>
    %197 = arith.addf %195, %196 : vector<4x1xf32>
    %198 = math.rsqrt %197 : vector<4x1xf32>
    %199 = vector.broadcast %187 : vector<4x1xf32> to vector<4x128xf32>
    %200 = vector.broadcast %181 : vector<1x128xf32> to vector<4x128xf32>
    %201 = arith.mulf %199, %200 : vector<4x128xf32>
    %202 = arith.addf %176, %201 : vector<4x128xf32>
    %203 = vector.broadcast %198 : vector<4x1xf32> to vector<4x128xf32>
    %204 = vector.broadcast %181 : vector<1x128xf32> to vector<4x128xf32>
    %205 = arith.mulf %203, %204 : vector<4x128xf32>
    %206 = arith.addf %180, %205 : vector<4x128xf32>
    %c0_146 = arith.constant 0 : index
    %c0_147 = arith.constant 0 : index
    %c0_148 = arith.constant 0 : index
    %207 = vector.load %arg6[%c0_146, %c0_147, %c0_148] : memref<1x16x128xf32, #tpu.memory_space<vmem>>, vector<1x16x128xf32>
    %208 = vector.shape_cast %207 : vector<1x16x128xf32> to vector<16x128xf32>
    %209 = tpu.concatenate %202, %202, %202, %202 in 0 : vector<4x128xf32>, vector<4x128xf32>, vector<4x128xf32>, vector<4x128xf32> -> vector<16x128xf32>
    %210 = arith.subf %208, %209 : vector<16x128xf32>
    %211 = tpu.concatenate %206, %206, %206, %206 in 0 : vector<4x128xf32>, vector<4x128xf32>, vector<4x128xf32>, vector<4x128xf32> -> vector<16x128xf32>
    %212 = arith.mulf %210, %211 : vector<16x128xf32>
    %c0_149 = arith.constant 0 : index
    %c0_150 = arith.constant 0 : index
    %c0_151 = arith.constant 0 : index
    %213 = vector.load %arg6[%c0_149, %c0_150, %c0_151] : memref<1x16x128xf32, #tpu.memory_space<vmem>>, vector<1x16x128xf32>
    %214 = vector.shape_cast %213 : vector<1x16x128xf32> to vector<16x128xf32>
    %215 = vector.shape_cast %212 : vector<16x128xf32> to vector<1x16x128xf32>
    tpu.vector_store %arg6[%c0_149, %c0_150, %c0_151], %215 {strides = array<i32>} : memref<1x16x128xf32, #tpu.memory_space<vmem>>, vector<1x16x128xf32>,
    return
  }
  func.func @transform_0(%arg0: i32) -> (i32, i32, i32) {
    %c0_i32 = arith.constant 0 : i32
    %c0_i32_0 = arith.constant 0 : i32
    %c0_i32_1 = arith.constant 0 : i32
    return %arg0, %c0_i32, %c0_i32_0 : i32, i32, i32
  }
  func.func @transform_1(%arg0: i32) -> (i32, i32) {
    %c0_i32 = arith.constant 0 : i32
    %c0_i32_0 = arith.constant 0 : i32
    %c0_i32_1 = arith.constant 0 : i32
    return %c0_i32, %c0_i32_0 : i32, i32
  }
  func.func @transform_2(%arg0: i32) -> (i32, i32, i32) {
    %c0_i32 = arith.constant 0 : i32
    %c0_i32_0 = arith.constant 0 : i32
    %c0_i32_1 = arith.constant 0 : i32
    %c0_i32_2 = arith.constant 0 : i32
    return %c0_i32, %c0_i32_0, %c0_i32_1 : i32, i32, i32
  }
  func.func @transform_3(%arg0: i32) -> (i32, i32) {
    %c0_i32 = arith.constant 0 : i32
    %c0_i32_0 = arith.constant 0 : i32
    %c0_i32_1 = arith.constant 0 : i32
    return %c0_i32, %c0_i32_0 : i32, i32
  }
  func.func @transform_4(%arg0: i32) -> (i32, i32) {
    %c0_i32 = arith.constant 0 : i32
    %c0_i32_0 = arith.constant 0 : i32
    %c0_i32_1 = arith.constant 0 : i32
    return %c0_i32, %c0_i32_0 : i32, i32
  }
  func.func @transform_5(%arg0: i32) -> (i32, i32, i32) {
    %c0_i32 = arith.constant 0 : i32
    %c0_i32_0 = arith.constant 0 : i32
    %c0_i32_1 = arith.constant 0 : i32
    return %arg0, %c0_i32, %c0_i32_0 : i32, i32, i32
  }
}

</mosaic_0001>

<llo_original>
// kernel: unet_skip_innermost.1
$region0: #{unet_skip_innermost.1}
  #allocation0 [shape = 'u32[]', space=smem, size = 0x4, offset = 0x4, fixed_abs, tag = 'smem constant byte address 0x4 - core index']
  #allocation1 [shape = 'u32[144,128]{1,0:T(1,128)}', space=vmem, size = 0x12000, scoped, tag = 'internal scratch']
  #allocation2 [shape = 'bf16[8,146]{1,0:T(8,128)(2,1)}', space=vmem, size = 0x1000, scoped, tag = 'scratch operand']
  %s0 = inlined_call_operand.vmem [shape: bf16[2,16,146], index: 0, kind: input, shape index: {}]
  %s1 = inlined_call_operand.vmem [shape: bf16[8,64], index: 1, kind: input, shape index: {}]
  %s2 = inlined_call_operand.vmem [shape: bf16[4,4,32], index: 2, kind: input, shape index: {}]
  %s3 = inlined_call_operand.vmem [shape: bf16[9,128], index: 3, kind: input, shape index: {}]
  %s4 = inlined_call_operand.vmem [shape: f32[2,128], index: 4, kind: input, shape index: {}]
  %s5 = inlined_call_operand.vmem [shape: f32[2,16,128], index: 5, kind: output, shape index: {}]
  %s6 = sld [smem:[#allocation0]]
  $region53: #{unet_skip_innermost.1} parent=0
    _
  %s8 = ssub.s32 1, %s6
  %s9 = scalar_select 0, %s8, %s6
  loop: start=0, step=1, limit=4
  $region2: #{unet_skip_innermost.1} parent=0 // loop_pre_header
    _
  $region3: #{unet_skip_innermost.1} parent=0 // loop_header
    %s11 = sphi 0, %s15
    %p12 = scmp.ge.s32.totalorder %s11, 4
    %s21 = sphi 0, %s23
    %s24 = sphi 0, %s21
    %s25 = sphi 0, %s24
    %s41 = sphi 0, %s25
    %s45 = sphi 0, %s45
    %s47 = sphi 0, %s45
    %s48 = sphi 0, %s47
    %s62 = sphi 0, %s48
    %s66 = sphi 0, %s66
    %s68 = sphi 0, %s66
    %s69 = sphi 0, %s68
    %s83 = sphi 0, %s69
    %s87 = sphi 0, %s87
    %s89 = sphi 0, %s87
    %s90 = sphi 0, %s89
    %s104 = sphi 0, %s90
    %s108 = sphi 0, %s108
    %s110 = sphi 0, %s108
    %s111 = sphi 0, %s110
    %s125 = sphi 0, %s111
    %s131 = sphi 0, %s133
    %s134 = sphi 0, %s131
    %s135 = sphi 0, %s134
    %s151 = sphi 0, %s135
  $region4: #{unet_skip_innermost.1} parent=0 // loop_header_branch
    %14 = sbr.rel (%p12) target = $region8
  $region5: #{unet_skip_innermost.1} parent=0 // loop_body
    %s16 = ssub.s32 %s11, 1
    %s17 = ssub.s32 %s11, 2
    %s18 = sadd.s32 %s11, 1
    %s19 = ssub.s32 %s11, %s18
    %p20 = scmp.eq.s32.totalorder %s19, 0
    %s22 = sadd.s32 %s21, 1
    %s23 = scalar_select %p20, %s21, %s22
    %p26 = pneg %p20
    %p27 = scmp.eq.s32.totalorder %s11, 1
    %p28 = por %p26, %p27
    %p29 = scmp.ne.s32.totalorder %s21, %s24
    %p30 = scmp.eq.s32.totalorder %s11, 0
    %p31 = por %p29, %p30
    %p32 = scmp.ne.s32.totalorder %s21, %s24
    %p33 = scmp.eq.s32.totalorder %s16, 1
    %p34 = por %p32, %p33
    %p35 = scmp.ne.s32.totalorder %s24, %s25
    %p36 = scmp.eq.s32.totalorder %s16, 0
    %p37 = por %p35, %p36
    %p38 = scmp.ne.s32.totalorder %s24, %s25
    %p39 = scmp.eq.s32.totalorder %s17, 1
    %p40 = por %p38, %p39
    %p42 = scmp.ne.s32.totalorder %s25, %s41
    %p43 = scmp.eq.s32.totalorder %s17, 0
    %p44 = por %p42, %p43
    %s46 = sadd.s32 %s45, 1
    %p49 = scmp.eq.s32.totalorder %s11, 1
    %p50 = scmp.ne.s32.totalorder %s45, %s47
    %p51 = scmp.eq.s32.totalorder %s11, 0
    %p52 = por %p50, %p51
    %p53 = scmp.ne.s32.totalorder %s45, %s47
    %p54 = scmp.eq.s32.totalorder %s16, 1
    %p55 = por %p53, %p54
    %p56 = scmp.ne.s32.totalorder %s47, %s48
    %p57 = scmp.eq.s32.totalorder %s16, 0
    %p58 = por %p56, %p57
    %p59 = scmp.ne.s32.totalorder %s47, %s48
    %p60 = scmp.eq.s32.totalorder %s17, 1
    %p61 = por %p59, %p60
    %p63 = scmp.ne.s32.totalorder %s48, %s62
    %p64 = scmp.eq.s32.totalorder %s17, 0
    %p65 = por %p63, %p64
    %s67 = sadd.s32 %s66, 1
    %p70 = scmp.eq.s32.totalorder %s11, 1
    %p71 = scmp.ne.s32.totalorder %s66, %s68
    %p72 = scmp.eq.s32.totalorder %s11, 0
    %p73 = por %p71, %p72
    %p74 = scmp.ne.s32.totalorder %s66, %s68
    %p75 = scmp.eq.s32.totalorder %s16, 1
    %p76 = por %p74, %p75
    %p77 = scmp.ne.s32.totalorder %s68, %s69
    %p78 = scmp.eq.s32.totalorder %s16, 0
    %p79 = por %p77, %p78
    %p80 = scmp.ne.s32.totalorder %s68, %s69
    %p81 = scmp.eq.s32.totalorder %s17, 1
    %p82 = por %p80, %p81
    %p84 = scmp.ne.s32.totalorder %s69, %s83
    %p85 = scmp.eq.s32.totalorder %s17, 0
    %p86 = por %p84, %p85
    %s88 = sadd.s32 %s87, 1
    %p91 = scmp.eq.s32.totalorder %s11, 1
    %p92 = scmp.ne.s32.totalorder %s87, %s89
    %p93 = scmp.eq.s32.totalorder %s11, 0
    %p94 = por %p92, %p93
    %p95 = scmp.ne.s32.totalorder %s87, %s89
    %p96 = scmp.eq.s32.totalorder %s16, 1
    %p97 = por %p95, %p96
    %p98 = scmp.ne.s32.totalorder %s89, %s90
    %p99 = scmp.eq.s32.totalorder %s16, 0
    %p100 = por %p98, %p99
    %p101 = scmp.ne.s32.totalorder %s89, %s90
    %p102 = scmp.eq.s32.totalorder %s17, 1
    %p103 = por %p101, %p102
    %p105 = scmp.ne.s32.totalorder %s90, %s104
    %p106 = scmp.eq.s32.totalorder %s17, 0
    %p107 = por %p105, %p106
    %s109 = sadd.s32 %s108, 1
    %p112 = scmp.eq.s32.totalorder %s11, 1
    %p113 = scmp.ne.s32.totalorder %s108, %s110
    %p114 = scmp.eq.s32.totalorder %s11, 0
    %p115 = por %p113, %p114
    %p116 = scmp.ne.s32.totalorder %s108, %s110
    %p117 = scmp.eq.s32.totalorder %s16, 1
    %p118 = por %p116, %p117
    %p119 = scmp.ne.s32.totalorder %s110, %s111
    %p120 = scmp.eq.s32.totalorder %s16, 0
    %p121 = por %p119, %p120
    %p122 = scmp.ne.s32.totalorder %s110, %s111
    %p123 = scmp.eq.s32.totalorder %s17, 1
    %p124 = por %p122, %p123
    %p126 = scmp.ne.s32.totalorder %s111, %s125
    %p127 = scmp.eq.s32.totalorder %s17, 0
    %p128 = por %p126, %p127
    %s129 = ssub.s32 %s11, %s18
    %p130 = scmp.eq.s32.totalorder %s129, 0
    %s132 = sadd.s32 %s131, 1
    %s133 = scalar_select %p130, %s131, %s132
    %p136 = pneg %p130
    %p137 = scmp.eq.s32.totalorder %s11, 1
    %p138 = por %p136, %p137
    %p139 = scmp.ne.s32.totalorder %s131, %s134
    %p140 = scmp.eq.s32.totalorder %s11, 0
    %p141 = por %p139, %p140
    %p142 = scmp.ne.s32.totalorder %s131, %s134
    %p143 = scmp.eq.s32.totalorder %s16, 1
    %p144 = por %p142, %p143
    %p145 = scmp.ne.s32.totalorder %s134, %s135
    %p146 = scmp.eq.s32.totalorder %s16, 0
    %p147 = por %p145, %p146
    %p148 = scmp.ne.s32.totalorder %s134, %s135
    %p149 = scmp.eq.s32.totalorder %s17, 1
    %p150 = por %p148, %p149
    %p152 = scmp.ne.s32.totalorder %s135, %s151
    %p153 = scmp.eq.s32.totalorder %s17, 0
    %p154 = por %p152, %p153
    %p155 = scmp.le.s32.totalorder 1, %s11
    %p156 = scmp.lt.s32.totalorder %s11, 3
    %p157 = pnand %p155, %p156
    %p158 = pneg %p157
    // Predicated region
    $region9: #{unet_skip_innermost.1} parent=5 // pred_check
      _
    $region10: #{unet_skip_innermost.1} parent=5 // pred_check_branch
      %160 = sbr.rel (%p157) target = $region12
    $region11: #{unet_skip_innermost.1} parent=5 // pred_region
      %s161 = ssub.s32 %s11, 1
      // Predicated region
      $region13: #{unet_skip_innermost.1} parent=11 // pred_check
        %p162 = pneg %p58
      $region14: #{unet_skip_innermost.1} parent=11 // pred_check_branch
        %164 = sbr.rel (%p162) target = $region16
      $region15: #{unet_skip_innermost.1} parent=11 // pred_region
        _
      $region16: #{unet_skip_innermost.1} parent=11 // pred_fallthru
        _
      // Predicated region
      $region17: #{unet_skip_innermost.1} parent=11 // pred_check
        %p165 = pneg %p79
      $region18: #{unet_skip_innermost.1} parent=11 // pred_check_branch
        %167 = sbr.rel (%p165) target = $region20
      $region19: #{unet_skip_innermost.1} parent=11 // pred_region
        _
      $region20: #{unet_skip_innermost.1} parent=11 // pred_fallthru
        _
      // Predicated region
      $region21: #{unet_skip_innermost.1} parent=11 // pred_check
        %p168 = pneg %p100
      $region22: #{unet_skip_innermost.1} parent=11 // pred_check_branch
        %170 = sbr.rel (%p168) target = $region24
      $region23: #{unet_skip_innermost.1} parent=11 // pred_region
        _
      $region24: #{unet_skip_innermost.1} parent=11 // pred_fallthru
        _
      // Predicated region
      $region25: #{unet_skip_innermost.1} parent=11 // pred_check
        %p171 = pneg %p121
      $region26: #{unet_skip_innermost.1} parent=11 // pred_check_branch
        %173 = sbr.rel (%p171) target = $region28
      $region27: #{unet_skip_innermost.1} parent=11 // pred_region
        _
      $region28: #{unet_skip_innermost.1} parent=11 // pred_fallthru
        _
    $region12: #{unet_skip_innermost.1} parent=5 // pred_fallthru
      _
    %p174 = scmp.lt.s32.totalorder %s11, 2
    // Predicated region
    $region29: #{unet_skip_innermost.1} parent=5 // pred_check
      %p175 = pneg %p174
    $region30: #{unet_skip_innermost.1} parent=5 // pred_check_branch
      %177 = sbr.rel (%p175) target = $region32
    $region31: #{unet_skip_innermost.1} parent=5 // pred_region
      // Predicated region
      $region33: #{unet_skip_innermost.1} parent=31 // pred_check
        %p178 = pneg %p31
      $region34: #{unet_skip_innermost.1} parent=31 // pred_check_branch
        %180 = sbr.rel (%p178) target = $region36
      $region35: #{unet_skip_innermost.1} parent=31 // pred_region
        %p181 = scmp.lt.s32.totalorder %s11, 1
        %s182 = scalar_select %p181, %s11, 1
        %s183 = smul.addr %s182, 4
        %s184 = smul.addr %s183, 4
        %s185 = scalar_lea.vmem %s0, %s184
      $region36: #{unet_skip_innermost.1} parent=31 // pred_fallthru
        _
    $region32: #{unet_skip_innermost.1} parent=5 // pred_fallthru
      _
    %p186 = scmp.le.s32.totalorder 1, %s11
    %p187 = scmp.lt.s32.totalorder %s11, 3
    %p188 = pnand %p186, %p187
    %p189 = pneg %p188
    // Predicated region
    $region37: #{unet_skip_innermost.1} parent=5 // pred_check
      _
    $region38: #{unet_skip_innermost.1} parent=5 // pred_check_branch
      %191 = sbr.rel (%p188) target = $region40
    $region39: #{unet_skip_innermost.1} parent=5 // pred_region
      %s192 = ssub.s32 %s11, 1
      %p193 = scmp.lt.s32.totalorder %s16, 1
      %s194 = scalar_select %p193, %s16, 1
      %s195 = smul.addr %s194, 4
      %s196 = smul.addr %s195, 4
      %s197 = scalar_lea.vmem %s0, %s196
      %p198 = pneg %p37
      %p199 = pneg %p34
      %p200 = pneg %p58
      %p201 = pneg %p55
      %p202 = pneg %p79
      %p203 = pneg %p76
      %p204 = pneg %p100
      %p205 = pneg %p97
      %p206 = pneg %p121
      %p207 = pneg %p118
      %p208 = pneg %p147
      %p209 = pneg %p144
      %p210 = scmp.lt.s32.totalorder %s16, 1
      %s211 = scalar_select %p210, %s16, 1
      %s212 = smul.addr %s211, 2
      %s213 = smul.addr %s212, 8
      %s214 = scalar_lea.vmem %s5, %s213
      %p215 = scmp.lt.s32.totalorder %s16, 1
      %s216 = scalar_select %p215, %s16, 1
      %s217 = smul.addr %s216, 4
      %s218 = smul.addr %s217, 4
      %s219 = scalar_lea.vmem %s0, %s218
      %p220 = scmp.lt.s32.totalorder %s16, 1
      %s221 = scalar_select %p220, %s16, 1
      %s222 = smul.addr %s221, 2
      %s223 = smul.addr %s222, 8
      %s224 = scalar_lea.vmem %s5, %s223
      %vm226 = vcmask 68608
      %227 = vst.msk [vmem:[#allocation2] sm:$0xf] %vm226, 0
      %vm228 = vcmask 142408
      %229 = vst.msk [vmem:[#allocation2 + $0x4] sm:$0xf] %vm228, 0
      %v230 = vld [vmem:[%s219 + $0x8] sm:$0xc]
      %v231 = vld [vmem:[%s3] sm:$0x1]
      %v233 = vpack.i.b16 %v231, %v231
      %v235 = vlaneseq
      %v236 = vshrl.u32 %v235, 7
      %v237 = vsub.s32 0, %v236
      %v238 = vrot.slane %v233, %v237
      %v239 = vmul.bf16 %v230, %v238
      %v240 = vld [vmem:[%s219 + $0x8] sm:$0x33]
      %v241 = vshrl.u32 %v231, 16
      %v242 = vpack.i.b16 %v241, %v241
      %v244 = vlaneseq
      %v245 = vshrl.u32 %v244, 7
      %v246 = vsub.s32 0, %v245
      %v247 = vrot.slane %v242, %v246
      %v249 = vunpack.c.l.b16 %v247
      %v250 = vpack.c.b16 %v249, %v249
      %251 = vrot.lane.b32.xlu0 %v250, 1
      %v252 = vpop.permute.xlu0 %251
      %v253 = vrot.slane %v252, 4
      %vm254 = vcmask 7168
      %v255 = vsel %vm254, %v253, %v252
      %v257 = vmul.bf16 %v240, %v255
      %v258 = vld [vmem:[%s219 + $0x8] sm:$0xcc]
      %v259 = vmul.bf16 %v258, %v255
      %v260 = vld [vmem:[%s3] sm:$0x2]
      %v262 = vpack.i.b16 %v260, %v260
      %v264 = vlaneseq
      %v265 = vshrl.u32 %v264, 7
      %v266 = vsub.s32 1, %v265
      %v267 = vrot.slane %v262, %v266
      %v269 = vunpack.c.l.b16 %v267
      %v270 = vpack.c.b16 %v269, %v269
      %271 = vrot.lane.b32.xlu0 %v270, 2
      %v272 = vpop.permute.xlu0 %271
      %v273 = vrot.slane %v272, 4
      %vm274 = vcmask 15360
      %v275 = vsel %vm274, %v273, %v272
      %v277 = vmul.bf16 %v240, %v275
      %v278 = vld [vmem:[%s219] sm:$0xcc]
      %v279 = vshrl.u32 %v260, 16
      %v280 = vpack.i.b16 %v279, %v279
      %v282 = vlaneseq
      %v283 = vshrl.u32 %v282, 7
      %v284 = vsub.s32 1, %v283
      %v285 = vrot.slane %v280, %v284
      %v287 = vunpack.c.l.b16 %v285
      %v288 = vpack.c.b16 %v287, %v287
      %289 = vrot.lane.b32.xlu0 %v288, 8
      %v290 = vpop.permute.xlu0 %289
      %v291 = vrot.slane %v290, 4
      %vm292 = vcmask 64512
      %v293 = vsel %vm292, %v291, %v290
      %v295 = vmul.bf16 %v278, %v293
      %v296 = vld [vmem:[%s219] sm:$0x33]
      %v297 = vld [vmem:[%s3] sm:$0x4]
      %v299 = vshrl.u32 %v297, 16
      %v300 = vpack.i.b16 %v299, %v299
      %v302 = vlaneseq
      %v303 = vshrl.u32 %v302, 7
      %v304 = vsub.s32 2, %v303
      %v305 = vrot.slane %v300, %v304
      %v307 = vunpack.c.l.b16 %v305
      %v308 = vpack.c.b16 %v307, %v307
      %309 = vrot.lane.b32.xlu0 %v308, 10
      %v310 = vpop.permute.xlu0 %309
      %v311 = vrot.slane %v310, 4
      %vm312 = vcmask 80896
      %v313 = vsel %vm312, %v311, %v310
      %v315 = vmul.bf16 %v296, %v313
      %v316 = vmul.bf16 %v258, %v293
      %v317 = vmul.bf16 %v240, %v313
      %v318 = vld [vmem:[%s3] sm:$0x8]
      %v320 = vpack.i.b16 %v318, %v318
      %v322 = vlaneseq
      %v323 = vshrl.u32 %v322, 7
      %v324 = vsub.s32 3, %v323
      %v325 = vrot.slane %v320, %v324
      %v327 = vunpack.c.l.b16 %v325
      %v328 = vpack.c.b16 %v327, %v327
      %329 = vrot.lane.b32.xlu0 %v328, 16
      %v330 = vpop.permute.xlu0 %329
      %v331 = vrot.slane %v330, 4
      %vm332 = vcmask 130048
      %v333 = vsel %vm332, %v331, %v330
      %v335 = vmul.bf16 %v278, %v333
      %v336 = vshrl.u32 %v318, 16
      %v337 = vpack.i.b16 %v336, %v336
      %v339 = vlaneseq
      %v340 = vshrl.u32 %v339, 7
      %v341 = vsub.s32 3, %v340
      %v342 = vrot.slane %v337, %v341
      %v344 = vunpack.c.l.b16 %v342
      %v345 = vpack.c.b16 %v344, %v344
      %346 = vrot.lane.b32.xlu0 %v345, 17
      %v347 = vpop.permute.xlu0 %346
      %v348 = vrot.slane %v347, 4
      %vm349 = vcmask 138240
      %v350 = vsel %vm349, %v348, %v347
      %v352 = vmul.bf16 %v296, %v350
      %v353 = vmul.bf16 %v278, %v350
      %v354 = vld [vmem:[%s3 + $0x4] sm:$0x1]
      %v356 = vpack.i.b16 %v354, %v354
      %v358 = vlaneseq
      %v359 = vshrl.u32 %v358, 7
      %v360 = vsub.s32 0, %v359
      %v361 = vrot.slane %v356, %v360
      %v363 = vunpack.c.l.b16 %v361
      %v364 = vpack.c.b16 %v363, %v363
      %365 = vrot.lane.b32.xlu0 %v364, 18
      %v366 = vpop.permute.xlu0 %365
      %v367 = vrot.slane %v366, 4
      %vm368 = vcmask 146432
      %v369 = vsel %vm368, %v367, %v366
      %v371 = vmul.bf16 %v296, %v369
      %v372 = vld [vmem:[%s1] sm:$0xf]
      %v374 = vunpack.c.l.b16 %v239
      %v375 = vpack.c.b16 %v374, %v374
      %v376 = vrot.slane %v375, 2
      %v378 = vunpack.c.l.b16 %v257
      %v379 = vunpack.c.h.b16 %v257
      %v380 = vpack.c.b16 %v378, %v378
      %v381 = vpack.c.b16 %v379, %v379
      %v382 = vrot.slane %v380, 6
      %v383 = vrot.slane %v381, 6
      %384 = vrot.lane.b32.xlu0 %v382, 127
      %v385 = vpop.permute.xlu0 %384
      %386 = vrot.lane.b32.xlu0 %v383, 127
      %v387 = vpop.permute.xlu0 %386
      %vm388 = vcmask 1039360
      %v389 = vsel %vm388, %v385, %v387
      %v391 = vunpack.c.l.b16 %v259
      %v392 = vunpack.c.h.b16 %v259
      %v393 = vpack.c.b16 %v391, %v391
      %v394 = vpack.c.b16 %v392, %v392
      %v395 = vrot.slane %v393, 6
      %v396 = vrot.slane %v394, 6
      %397 = vrot.lane.b32.xlu0 %v395, 127
      %v398 = vpop.permute.xlu0 %397
      %399 = vrot.lane.b32.xlu0 %v396, 127
      %v400 = vpop.permute.xlu0 %399
      %v401 = vsel %vm388, %v398, %v400
      %v403 = vunpack.c.l.b16 %v277
      %v404 = vunpack.c.h.b16 %v277
      %v405 = vpack.c.b16 %v403, %v403
      %v406 = vpack.c.b16 %v404, %v404
      %v407 = vrot.slane %v405, 2
      %v408 = vrot.slane %v406, 2
      %409 = vrot.lane.b32.xlu0 %v407, 126
      %v410 = vpop.permute.xlu0 %409
      %411 = vrot.lane.b32.xlu0 %v408, 126
      %v412 = vpop.permute.xlu0 %411
      %vm413 = vcmask 1031168
      %v414 = vsel %vm413, %v410, %v412
      %v416 = vunpack.c.l.b16 %v295
      %v417 = vunpack.c.h.b16 %v295
      %v418 = vpack.c.b16 %v416, %v416
      %v419 = vpack.c.b16 %v417, %v417
      %v420 = vrot.slane %v418, 2
      %v421 = vrot.slane %v419, 2
      %422 = vrot.lane.b32.xlu0 %v420, 120
      %v423 = vpop.permute.xlu0 %422
      %424 = vrot.lane.b32.xlu0 %v421, 120
      %v425 = vpop.permute.xlu0 %424
      %vm426 = vcmask 982016
      %v427 = vsel %vm426, %v423, %v425
      %v429 = vunpack.c.l.b16 %v296
      %v430 = vunpack.c.h.b16 %v296
      %v431 = vpack.c.b16 %v429, %v429
      %v432 = vpack.c.b16 %v430, %v430
      %v433 = vrot.slane %v431, 6
      %v434 = vrot.slane %v432, 6
      %435 = vrot.lane.b32.xlu0 %v433, 119
      %v436 = vpop.permute.xlu0 %435
      %437 = vrot.lane.b32.xlu0 %v434, 119
      %v438 = vpop.permute.xlu0 %437
      %vm439 = vcmask 973824
      %v440 = vsel %vm439, %v436, %v438
      %v442 = vunpack.c.l.b16 %v278
      %v443 = vunpack.c.h.b16 %v278
      %v444 = vpack.c.b16 %v442, %v442
      %v445 = vpack.c.b16 %v443, %v443
      %v446 = vrot.slane %v444, 6
      %v447 = vrot.slane %v445, 6
      %448 = vrot.lane.b32.xlu0 %v446, 119
      %v449 = vpop.permute.xlu0 %448
      %450 = vrot.lane.b32.xlu0 %v447, 119
      %v451 = vpop.permute.xlu0 %450
      %v452 = vsel %vm439, %v449, %v451
      %v454 = vunpack.c.l.b16 %v315
      %v455 = vunpack.c.h.b16 %v315
      %v456 = vpack.c.b16 %v454, %v454
      %v457 = vpack.c.b16 %v455, %v455
      %v458 = vrot.slane %v456, 2
      %v459 = vrot.slane %v457, 2
      %460 = vrot.lane.b32.xlu0 %v458, 118
      %v461 = vpop.permute.xlu0 %460
      %462 = vrot.lane.b32.xlu0 %v459, 118
      %v463 = vpop.permute.xlu0 %462
      %vm464 = vcmask 965632
      %v465 = vsel %vm464, %v461, %v463
      %v467 = vunpack.c.l.b16 %v316
      %v468 = vunpack.c.h.b16 %v316
      %v469 = vpack.c.b16 %v467, %v467
      %v470 = vpack.c.b16 %v468, %v468
      %v471 = vrot.slane %v469, 2
      %v472 = vrot.slane %v470, 2
      %473 = vrot.lane.b32.xlu0 %v471, 120
      %v474 = vpop.permute.xlu0 %473
      %475 = vrot.lane.b32.xlu0 %v472, 120
      %v476 = vpop.permute.xlu0 %475
      %v477 = vsel %vm426, %v474, %v476
      %v479 = vunpack.c.l.b16 %v240
      %v480 = vunpack.c.h.b16 %v240
      %v481 = vpack.c.b16 %v479, %v479
      %v482 = vpack.c.b16 %v480, %v480
      %v483 = vrot.slane %v481, 6
      %v484 = vrot.slane %v482, 6
      %485 = vrot.lane.b32.xlu0 %v483, 119
      %v486 = vpop.permute.xlu0 %485
      %487 = vrot.lane.b32.xlu0 %v484, 119
      %v488 = vpop.permute.xlu0 %487
      %v489 = vsel %vm439, %v486, %v488
      %v491 = vunpack.c.l.b16 %v258
      %v492 = vunpack.c.h.b16 %v258
      %v493 = vpack.c.b16 %v491, %v491
      %v494 = vpack.c.b16 %v492, %v492
      %v495 = vrot.slane %v493, 6
      %v496 = vrot.slane %v494, 6
      %497 = vrot.lane.b32.xlu0 %v495, 119
      %v498 = vpop.permute.xlu0 %497
      %499 = vrot.lane.b32.xlu0 %v496, 119
      %v500 = vpop.permute.xlu0 %499
      %v501 = vsel %vm439, %v498, %v500
      %v503 = vunpack.c.l.b16 %v317
      %v504 = vunpack.c.h.b16 %v317
      %v505 = vpack.c.b16 %v503, %v503
      %v506 = vpack.c.b16 %v504, %v504
      %v507 = vrot.slane %v505, 2
      %v508 = vrot.slane %v506, 2
      %509 = vrot.lane.b32.xlu0 %v507, 118
      %v510 = vpop.permute.xlu0 %509
      %511 = vrot.lane.b32.xlu0 %v508, 118
      %v512 = vpop.permute.xlu0 %511
      %v513 = vsel %vm464, %v510, %v512
      %v515 = vunpack.c.l.b16 %v335
      %v516 = vunpack.c.h.b16 %v335
      %v517 = vpack.c.b16 %v515, %v515
      %v518 = vpack.c.b16 %v516, %v516
      %v519 = vrot.slane %v517, 2
      %v520 = vrot.slane %v518, 2
      %521 = vrot.lane.b32.xlu0 %v519, 112
      %v522 = vpop.permute.xlu0 %521
      %523 = vrot.lane.b32.xlu0 %v520, 112
      %v524 = vpop.permute.xlu0 %523
      %vm525 = vcmask 916480
      %v526 = vsel %vm525, %v522, %v524
      %v528 = vunpack.c.l.b16 %v352
      %v529 = vunpack.c.h.b16 %v352
      %v530 = vpack.c.b16 %v528, %v528
      %v531 = vpack.c.b16 %v529, %v529
      %v532 = vrot.slane %v530, 6
      %v533 = vrot.slane %v531, 6
      %534 = vrot.lane.b32.xlu0 %v532, 111
      %v535 = vpop.permute.xlu0 %534
      %536 = vrot.lane.b32.xlu0 %v533, 111
      %v537 = vpop.permute.xlu0 %536
      %vm538 = vcmask 908288
      %v539 = vsel %vm538, %v535, %v537
      %v541 = vunpack.c.l.b16 %v353
      %v542 = vunpack.c.h.b16 %v353
      %v543 = vpack.c.b16 %v541, %v541
      %v544 = vpack.c.b16 %v542, %v542
      %v545 = vrot.slane %v543, 6
      %v546 = vrot.slane %v544, 6
      %547 = vrot.lane.b32.xlu0 %v545, 111
      %v548 = vpop.permute.xlu0 %547
      %549 = vrot.lane.b32.xlu0 %v546, 111
      %v550 = vpop.permute.xlu0 %549
      %v551 = vsel %vm538, %v548, %v550
      %v553 = vunpack.c.l.b16 %v371
      %v554 = vunpack.c.h.b16 %v371
      %v555 = vpack.c.b16 %v553, %v553
      %v556 = vpack.c.b16 %v554, %v554
      %v557 = vrot.slane %v555, 2
      %v558 = vrot.slane %v556, 2
      %559 = vrot.lane.b32.xlu0 %v557, 110
      %v560 = vpop.permute.xlu0 %559
      %561 = vrot.lane.b32.xlu0 %v558, 110
      %v562 = vpop.permute.xlu0 %561
      %vm563 = vcmask 900096
      %v564 = vsel %vm563, %v560, %v562
      %vm565 = vcmask 1041408
      %v568 = vsel %vm565, %v376, %v389
      %vm569 = vcmask 1043456
      %v571 = vsel %vm569, %v568, %v401
      %vm572 = vcmask 1045504
      %v574 = vsel %vm572, %v571, %v414
      %v578 = vsel %vm565, %v427, %v440
      %v580 = vsel %vm569, %v578, %v452
      %v582 = vsel %vm572, %v580, %v465
      %v586 = vsel %vm565, %v477, %v489
      %v588 = vsel %vm569, %v586, %v501
      %v590 = vsel %vm572, %v588, %v513
      %v594 = vsel %vm565, %v526, %v539
      %v596 = vsel %vm569, %v594, %v551
      %v598 = vsel %vm572, %v596, %v564
      %vm600 = vcmask 523264
      %v602 = vsel %vm600, %v372, 0
      %604 = vmatprep.subr.bf16.mxu0 0
      %605 = vmatpush1.bf16.msra.mxu0 0
      %606 = vmatprep.subr.bf16.mxu0 0
      %607 = vmatpush1.bf16.msra.mxu0 0
      %608 = vmatprep.subr.bf16.mxu0 0
      %609 = vmatpush1.bf16.msra.mxu0 0
      %610 = vmatprep.subr.bf16.mxu0 0
      %611 = vmatpush1.bf16.msra.mxu0 0
      %612 = vmatprep.subr.bf16.mxu0 0
      %613 = vmatpush1.bf16.msra.mxu0 %v598
      %614 = vmatprep.subr.bf16.mxu0 0
      %615 = vmatpush1.bf16.msra.mxu0 %v590
      %616 = vmatprep.subr.bf16.mxu0 0
      %617 = vmatpush1.bf16.msra.mxu0 %v582
      %618 = vmatprep.subr.bf16.mxu0 0
      %619 = vmatpush1.bf16.msra.mxu0 %v574
      %620 = vmatprep.subr.bf16.mxu0 0
      %621 = vmatpush2.bf16.msra.mxu0 0
      %622 = vmatprep.subr.bf16.mxu0 0
      %623 = vmatpush2.bf16.msra.mxu0 0
      %624 = vmatprep.subr.bf16.mxu0 0
      %625 = vmatpush2.bf16.msra.mxu0 0
      %626 = vmatprep.subr.bf16.mxu0 0
      %627 = vmatpush2.bf16.msra.mxu0 0
      %628 = vmatprep.subr.bf16.mxu0 0
      %629 = vmatpush2.bf16.msra.mxu0 0
      %630 = vmatprep.subr.bf16.mxu0 0
      %631 = vmatpush2.bf16.msra.mxu0 0
      %632 = vmatprep.subr.bf16.mxu0 0
      %633 = vmatpush2.bf16.msra.mxu0 0
      %634 = vmatprep.subr.bf16.mxu0 0
      %635 = vmatpush2.bf16.msra.mxu0 0
      %636 = vmatprep.mubr.bf16.mxu0 0
      %637 = vmatmul.mubr.bf16.gmra.mxu0 %v602
      %v638 = vpop.f32.mrf.mxu0
      %v639 = vadd.f32 0.0, %v638
      %v640 = vpop.f32.mrf.mxu0
      %v641 = vpop.f32.mrf.mxu0
      %v642 = vpop.f32.mrf.mxu0
      %643 = vdwg.mxu0
      %v644 = vmax.f32 %v639, 0.0
      %v645 = vpack.c.bf16 %v644, %v644
      %v647 = vunpack.c.l.b16 %v645
      %v648 = vpack.c.b16 %v647, %v647
      %649 = vrot.lane.b32.xlu0 %v648, 9
      %v650 = vpop.permute.xlu0 %649
      %v651 = vrot.slane %v650, 4
      %vm652 = vcmask 72704
      %v653 = vsel %vm652, %v651, %v650
      %vm655 = vcmask 1043528
      %vm656 = vcmask 72708
      %vm657 = vmor %vm656, %vm655
      %658 = vst.msk [vmem:[#allocation2] sm:$0xff] %vm657, %v653
      %v659 = vld [vmem:[#allocation2] sm:$0xf]
      %v660 = vld [vmem:[%s3] sm:$0x1]
      %v662 = vpack.i.b16 %v660, %v660
      %v664 = vlaneseq
      %v665 = vshrl.u32 %v664, 7
      %v666 = vsub.s32 0, %v665
      %v667 = vrot.slane %v662, %v666
      %v668 = vmul.bf16 %v659, %v667
      %v669 = vld [vmem:[#allocation2] sm:$0xff]
      %v670 = vshrl.u32 %v660, 16
      %v671 = vpack.i.b16 %v670, %v670
      %v673 = vlaneseq
      %v674 = vshrl.u32 %v673, 7
      %v675 = vsub.s32 0, %v674
      %v676 = vrot.slane %v671, %v675
      %v678 = vunpack.c.l.b16 %v676
      %v679 = vpack.c.b16 %v678, %v678
      %680 = vrot.lane.b32.xlu0 %v679, 1
      %v681 = vpop.permute.xlu0 %680
      %v682 = vrot.slane %v681, 4
      %v683 = vsel %vm254, %v682, %v681
      %v685 = vmul.bf16 %v669, %v683
      %v686 = vld [vmem:[%s3] sm:$0x2]
      %v688 = vpack.i.b16 %v686, %v686
      %v690 = vlaneseq
      %v691 = vshrl.u32 %v690, 7
      %v692 = vsub.s32 1, %v691
      %v693 = vrot.slane %v688, %v692
      %v695 = vunpack.c.l.b16 %v693
      %v696 = vpack.c.b16 %v695, %v695
      %697 = vrot.lane.b32.xlu0 %v696, 2
      %v698 = vpop.permute.xlu0 %697
      %v699 = vrot.slane %v698, 4
      %v700 = vsel %vm274, %v699, %v698
      %v702 = vmul.bf16 %v669, %v700
      %v703 = vshrl.u32 %v686, 16
      %v704 = vpack.i.b16 %v703, %v703
      %v706 = vlaneseq
      %v707 = vshrl.u32 %v706, 7
      %v708 = vsub.s32 1, %v707
      %v709 = vrot.slane %v704, %v708
      %v711 = vunpack.c.l.b16 %v709
      %v712 = vpack.c.b16 %v711, %v711
      %713 = vrot.lane.b32.xlu0 %v712, 8
      %v714 = vpop.permute.xlu0 %713
      %v715 = vrot.slane %v714, 4
      %v716 = vsel %vm292, %v715, %v714
      %v718 = vmul.bf16 %v669, %v716
      %v719 = vld [vmem:[%s3] sm:$0x4]
      %v721 = vshrl.u32 %v719, 16
      %v722 = vpack.i.b16 %v721, %v721
      %v724 = vlaneseq
      %v725 = vshrl.u32 %v724, 7
      %v726 = vsub.s32 2, %v725
      %v727 = vrot.slane %v722, %v726
      %v729 = vunpack.c.l.b16 %v727
      %v730 = vpack.c.b16 %v729, %v729
      %731 = vrot.lane.b32.xlu0 %v730, 10
      %v732 = vpop.permute.xlu0 %731
      %v733 = vrot.slane %v732, 4
      %v734 = vsel %vm312, %v733, %v732
      %v736 = vmul.bf16 %v669, %v734
      %v737 = vld [vmem:[%s3] sm:$0x8]
      %v739 = vpack.i.b16 %v737, %v737
      %v741 = vlaneseq
      %v742 = vshrl.u32 %v741, 7
      %v743 = vsub.s32 3, %v742
      %v744 = vrot.slane %v739, %v743
      %v746 = vunpack.c.l.b16 %v744
      %v747 = vpack.c.b16 %v746, %v746
      %748 = vrot.lane.b32.xlu0 %v747, 16
      %v749 = vpop.permute.xlu0 %748
      %v750 = vrot.slane %v749, 4
      %v751 = vsel %vm332, %v750, %v749
      %v753 = vmul.bf16 %v669, %v751
      %v754 = vshrl.u32 %v737, 16
      %v755 = vpack.i.b16 %v754, %v754
      %v757 = vlaneseq
      %v758 = vshrl.u32 %v757, 7
      %v759 = vsub.s32 3, %v758
      %v760 = vrot.slane %v755, %v759
      %v762 = vunpack.c.l.b16 %v760
      %v763 = vpack.c.b16 %v762, %v762
      %764 = vrot.lane.b32.xlu0 %v763, 17
      %v765 = vpop.permute.xlu0 %764
      %v766 = vrot.slane %v765, 4
      %v767 = vsel %vm349, %v766, %v765
      %v769 = vmul.bf16 %v669, %v767
      %v770 = vld [vmem:[%s3 + $0x4] sm:$0x1]
      %v772 = vpack.i.b16 %v770, %v770
      %v774 = vlaneseq
      %v775 = vshrl.u32 %v774, 7
      %v776 = vsub.s32 0, %v775
      %v777 = vrot.slane %v772, %v776
      %v779 = vunpack.c.l.b16 %v777
      %v780 = vpack.c.b16 %v779, %v779
      %781 = vrot.lane.b32.xlu0 %v780, 18
      %v782 = vpop.permute.xlu0 %781
      %v783 = vrot.slane %v782, 4
      %v784 = vsel %vm368, %v783, %v782
      %v786 = vmul.bf16 %v669, %v784
      %v788 = vunpack.c.l.b16 %v669
      %v789 = vunpack.c.h.b16 %v669
      %v790 = vpack.c.b16 %v788, %v788
      %v791 = vpack.c.b16 %v789, %v789
      %v793 = vunpack.c.l.b16 %v718
      %v794 = vunpack.c.h.b16 %v718
      %v795 = vpack.c.b16 %v793, %v793
      %v796 = vpack.c.b16 %v794, %v794
      %797 = vrot.lane.b32.xlu0 %v795, 1
      %v798 = vpop.permute.xlu0 %797
      %799 = vrot.lane.b32.xlu0 %v796, 1
      %v800 = vpop.permute.xlu0 %799
      %v801 = vsel %vm254, %v798, %v800
      %v803 = vunpack.c.l.b16 %v685
      %v804 = vunpack.c.h.b16 %v685
      %v805 = vpack.c.b16 %v803, %v803
      %v806 = vpack.c.b16 %v804, %v804
      %807 = vrot.lane.b32.xlu0 %v805, 8
      %v808 = vpop.permute.xlu0 %807
      %809 = vrot.lane.b32.xlu0 %v806, 8
      %v810 = vpop.permute.xlu0 %809
      %v811 = vsel %vm292, %v808, %v810
      %v813 = vunpack.c.l.b16 %v668
      %v814 = vpack.c.b16 %v813, %v813
      %815 = vrot.lane.b32.xlu0 %v814, 9
      %v816 = vpop.permute.xlu0 %815
      %v819 = vsel %vm569, %v790, %v798
      %v822 = vsel %vm569, %v791, %v801
      %v825 = vsel %vm569, %v808, %v816
      %v827 = vsel %vm569, %v811, %v816
      %v828 = vld [vmem:[%s2] sm:$0x3]
      %833 = vrot.lane.b32.xlu0 %v819, 119
      %v834 = vpop.permute.xlu0 %833
      %835 = vrot.lane.b32.xlu0 %v822, 119
      %v836 = vpop.permute.xlu0 %835
      %837 = vrot.lane.b32.xlu0 %v825, 119
      %v838 = vpop.permute.xlu0 %837
      %839 = vrot.lane.b32.xlu0 %v827, 119
      %v840 = vpop.permute.xlu0 %839
      %v841 = vsel %vm439, %v834, %v836
      %v842 = vsel %vm439, %v838, %v840
      %vm845 = vcmask 261120
      %v847 = vsel %vm845, %v828, 0
      %849 = vmatprep.subr.bf16.mxu0 0
      %850 = vmatpush1.bf16.msra.mxu0 0
      %851 = vmatprep.subr.bf16.mxu0 0
      %852 = vmatpush1.bf16.msra.mxu0 0
      %853 = vmatprep.subr.bf16.mxu0 0
      %854 = vmatpush1.bf16.msra.mxu0 0
      %855 = vmatprep.subr.bf16.mxu0 0
      %856 = vmatpush1.bf16.msra.mxu0 0
      %857 = vmatprep.subr.bf16.mxu0 0
      %858 = vmatpush1.bf16.msra.mxu0 0
      %859 = vmatprep.subr.bf16.mxu0 0
      %860 = vmatpush1.bf16.msra.mxu0 0
      %861 = vmatprep.subr.bf16.mxu0 0
      %862 = vmatpush1.bf16.msra.mxu0 %v842
      %863 = vmatprep.subr.bf16.mxu0 0
      %864 = vmatpush1.bf16.msra.mxu0 %v841
      %865 = vmatprep.subr.bf16.mxu0 0
      %866 = vmatpush2.bf16.msra.mxu0 0
      %867 = vmatprep.subr.bf16.mxu0 0
      %868 = vmatpush2.bf16.msra.mxu0 0
      %869 = vmatprep.subr.bf16.mxu0 0
      %870 = vmatpush2.bf16.msra.mxu0 0
      %871 = vmatprep.subr.bf16.mxu0 0
      %872 = vmatpush2.bf16.msra.mxu0 0
      %873 = vmatprep.subr.bf16.mxu0 0
      %874 = vmatpush2.bf16.msra.mxu0 0
      %875 = vmatprep.subr.bf16.mxu0 0
      %876 = vmatpush2.bf16.msra.mxu0 0
      %877 = vmatprep.subr.bf16.mxu0 0
      %878 = vmatpush2.bf16.msra.mxu0 0
      %879 = vmatprep.subr.bf16.mxu0 0
      %880 = vmatpush2.bf16.msra.mxu0 0
      %881 = vmatprep.mubr.bf16.mxu0 0
      %882 = vmatmul.mubr.bf16.gmra.mxu0 %v847
      %v883 = vpop.f32.mrf.mxu0
      %v884 = vadd.f32 0.0, %v883
      %v885 = vpop.f32.mrf.mxu0
      %v886 = vpop.f32.mrf.mxu0
      %v887 = vpop.f32.mrf.mxu0
      %888 = vdwg.mxu0
      %889 = vst [vmem:[%s224] sm:$0xf] %v884
      %v890 = vadd.f32 %v884, 0.0
      %v891 = vmul.f32 %v884, %v884
      %v892 = vadd.f32 %v891, 0.0
      %v894 = vunpack.c.l.b16 %v736
      %v895 = vunpack.c.h.b16 %v736
      %v896 = vpack.c.b16 %v894, %v894
      %v897 = vpack.c.b16 %v895, %v895
      %898 = vrot.lane.b32.xlu0 %v790, 1
      %v899 = vpop.permute.xlu0 %898
      %900 = vrot.lane.b32.xlu0 %v791, 1
      %v901 = vpop.permute.xlu0 %900
      %v902 = vsel %vm254, %v899, %v901
      %v904 = vunpack.c.l.b16 %v702
      %v905 = vunpack.c.h.b16 %v702
      %v906 = vpack.c.b16 %v904, %v904
      %v907 = vpack.c.b16 %v905, %v905
      %908 = vrot.lane.b32.xlu0 %v906, 8
      %v909 = vpop.permute.xlu0 %908
      %910 = vrot.lane.b32.xlu0 %v907, 8
      %v911 = vpop.permute.xlu0 %910
      %v912 = vsel %vm292, %v909, %v911
      %913 = vrot.lane.b32.xlu0 %v805, 9
      %v914 = vpop.permute.xlu0 %913
      %915 = vrot.lane.b32.xlu0 %v806, 9
      %v916 = vpop.permute.xlu0 %915
      %v917 = vsel %vm652, %v914, %v916
      %v920 = vsel %vm569, %v896, %v899
      %v923 = vsel %vm569, %v897, %v902
      %v926 = vsel %vm569, %v909, %v914
      %v929 = vsel %vm569, %v912, %v917
      %s930 = scalar_lea.vmem %s2, 2
      %v931 = vld [vmem:[%s930] sm:$0x3]
      %936 = vrot.lane.b32.xlu0 %v920, 118
      %v937 = vpop.permute.xlu0 %936
      %938 = vrot.lane.b32.xlu0 %v923, 118
      %v939 = vpop.permute.xlu0 %938
      %940 = vrot.lane.b32.xlu0 %v926, 118
      %v941 = vpop.permute.xlu0 %940
      %942 = vrot.lane.b32.xlu0 %v929, 118
      %v943 = vpop.permute.xlu0 %942
      %v944 = vsel %vm464, %v937, %v939
      %v945 = vsel %vm464, %v941, %v943
      %v949 = vsel %vm845, %v931, 0
      %951 = vmatprep.subr.bf16.mxu0 0
      %952 = vmatpush1.bf16.msra.mxu0 0
      %953 = vmatprep.subr.bf16.mxu0 0
      %954 = vmatpush1.bf16.msra.mxu0 0
      %955 = vmatprep.subr.bf16.mxu0 0
      %956 = vmatpush1.bf16.msra.mxu0 0
      %957 = vmatprep.subr.bf16.mxu0 0
      %958 = vmatpush1.bf16.msra.mxu0 0
      %959 = vmatprep.subr.bf16.mxu0 0
      %960 = vmatpush1.bf16.msra.mxu0 0
      %961 = vmatprep.subr.bf16.mxu0 0
      %962 = vmatpush1.bf16.msra.mxu0 0
      %963 = vmatprep.subr.bf16.mxu0 0
      %964 = vmatpush1.bf16.msra.mxu0 %v945
      %965 = vmatprep.subr.bf16.mxu0 0
      %966 = vmatpush1.bf16.msra.mxu0 %v944
      %967 = vmatprep.subr.bf16.mxu0 0
      %968 = vmatpush2.bf16.msra.mxu0 0
      %969 = vmatprep.subr.bf16.mxu0 0
      %970 = vmatpush2.bf16.msra.mxu0 0
      %971 = vmatprep.subr.bf16.mxu0 0
      %972 = vmatpush2.bf16.msra.mxu0 0
      %973 = vmatprep.subr.bf16.mxu0 0
      %974 = vmatpush2.bf16.msra.mxu0 0
      %975 = vmatprep.subr.bf16.mxu0 0
      %976 = vmatpush2.bf16.msra.mxu0 0
      %977 = vmatprep.subr.bf16.mxu0 0
      %978 = vmatpush2.bf16.msra.mxu0 0
      %979 = vmatprep.subr.bf16.mxu0 0
      %980 = vmatpush2.bf16.msra.mxu0 0
      %981 = vmatprep.subr.bf16.mxu0 0
      %982 = vmatpush2.bf16.msra.mxu0 0
      %983 = vmatprep.mubr.bf16.mxu0 0
      %984 = vmatmul.mubr.bf16.gmra.mxu0 %v949
      %v985 = vpop.f32.mrf.mxu0
      %v986 = vadd.f32 0.0, %v985
      %v987 = vpop.f32.mrf.mxu0
      %v988 = vpop.f32.mrf.mxu0
      %v989 = vpop.f32.mrf.mxu0
      %990 = vdwg.mxu0
      %991 = vst [vmem:[%s224 + $0x4] sm:$0xf] %v986
      %v992 = vadd.f32 %v890, %v986
      %v993 = vmul.f32 %v986, %v986
      %v994 = vadd.f32 %v892, %v993
      %v996 = vunpack.c.l.b16 %v769
      %v997 = vunpack.c.h.b16 %v769
      %v998 = vpack.c.b16 %v996, %v996
      %v999 = vpack.c.b16 %v997, %v997
      %v1001 = vunpack.c.l.b16 %v753
      %v1002 = vunpack.c.h.b16 %v753
      %v1003 = vpack.c.b16 %v1001, %v1001
      %v1004 = vpack.c.b16 %v1002, %v1002
      %1005 = vrot.lane.b32.xlu0 %v1003, 1
      %v1006 = vpop.permute.xlu0 %1005
      %1007 = vrot.lane.b32.xlu0 %v1004, 1
      %v1008 = vpop.permute.xlu0 %1007
      %v1009 = vsel %vm254, %v1006, %v1008
      %1010 = vrot.lane.b32.xlu0 %v790, 8
      %v1011 = vpop.permute.xlu0 %1010
      %1012 = vrot.lane.b32.xlu0 %v791, 8
      %v1013 = vpop.permute.xlu0 %1012
      %v1014 = vsel %vm292, %v1011, %v1013
      %1015 = vrot.lane.b32.xlu0 %v795, 9
      %v1016 = vpop.permute.xlu0 %1015
      %1017 = vrot.lane.b32.xlu0 %v796, 9
      %v1018 = vpop.permute.xlu0 %1017
      %v1019 = vsel %vm652, %v1016, %v1018
      %v1022 = vsel %vm569, %v998, %v1006
      %v1025 = vsel %vm569, %v999, %v1009
      %v1028 = vsel %vm569, %v1011, %v1016
      %v1031 = vsel %vm569, %v1014, %v1019
      %s1032 = scalar_lea.vmem %s2, 4
      %v1033 = vld [vmem:[%s1032] sm:$0x3]
      %1038 = vrot.lane.b32.xlu0 %v1022, 111
      %v1039 = vpop.permute.xlu0 %1038
      %1040 = vrot.lane.b32.xlu0 %v1025, 111
      %v1041 = vpop.permute.xlu0 %1040
      %1042 = vrot.lane.b32.xlu0 %v1028, 111
      %v1043 = vpop.permute.xlu0 %1042
      %1044 = vrot.lane.b32.xlu0 %v1031, 111
      %v1045 = vpop.permute.xlu0 %1044
      %v1046 = vsel %vm538, %v1039, %v1041
      %v1047 = vsel %vm538, %v1043, %v1045
      %v1051 = vsel %vm845, %v1033, 0
      %1053 = vmatprep.subr.bf16.mxu0 0
      %1054 = vmatpush1.bf16.msra.mxu0 0
      %1055 = vmatprep.subr.bf16.mxu0 0
      %1056 = vmatpush1.bf16.msra.mxu0 0
      %1057 = vmatprep.subr.bf16.mxu0 0
      %1058 = vmatpush1.bf16.msra.mxu0 0
      %1059 = vmatprep.subr.bf16.mxu0 0
      %1060 = vmatpush1.bf16.msra.mxu0 0
      %1061 = vmatprep.subr.bf16.mxu0 0
      %1062 = vmatpush1.bf16.msra.mxu0 0
      %1063 = vmatprep.subr.bf16.mxu0 0
      %1064 = vmatpush1.bf16.msra.mxu0 0
      %1065 = vmatprep.subr.bf16.mxu0 0
      %1066 = vmatpush1.bf16.msra.mxu0 %v1047
      %1067 = vmatprep.subr.bf16.mxu0 0
      %1068 = vmatpush1.bf16.msra.mxu0 %v1046
      %1069 = vmatprep.subr.bf16.mxu0 0
      %1070 = vmatpush2.bf16.msra.mxu0 0
      %1071 = vmatprep.subr.bf16.mxu0 0
      %1072 = vmatpush2.bf16.msra.mxu0 0
      %1073 = vmatprep.subr.bf16.mxu0 0
      %1074 = vmatpush2.bf16.msra.mxu0 0
      %1075 = vmatprep.subr.bf16.mxu0 0
      %1076 = vmatpush2.bf16.msra.mxu0 0
      %1077 = vmatprep.subr.bf16.mxu0 0
      %1078 = vmatpush2.bf16.msra.mxu0 0
      %1079 = vmatprep.subr.bf16.mxu0 0
      %1080 = vmatpush2.bf16.msra.mxu0 0
      %1081 = vmatprep.subr.bf16.mxu0 0
      %1082 = vmatpush2.bf16.msra.mxu0 0
      %1083 = vmatprep.subr.bf16.mxu0 0
      %1084 = vmatpush2.bf16.msra.mxu0 0
      %1085 = vmatprep.mubr.bf16.mxu0 0
      %1086 = vmatmul.mubr.bf16.gmra.mxu0 %v1051
      %v1087 = vpop.f32.mrf.mxu0
      %v1088 = vadd.f32 0.0, %v1087
      %v1089 = vpop.f32.mrf.mxu0
      %v1090 = vpop.f32.mrf.mxu0
      %v1091 = vpop.f32.mrf.mxu0
      %1092 = vdwg.mxu0
      %1093 = vst [vmem:[%s224 + $0x8] sm:$0xf] %v1088
      %v1094 = vadd.f32 %v992, %v1088
      %v1095 = vmul.f32 %v1088, %v1088
      %v1096 = vadd.f32 %v994, %v1095
      %v1098 = vunpack.c.l.b16 %v786
      %v1099 = vunpack.c.h.b16 %v786
      %v1100 = vpack.c.b16 %v1098, %v1098
      %v1101 = vpack.c.b16 %v1099, %v1099
      %1102 = vrot.lane.b32.xlu0 %v998, 1
      %v1103 = vpop.permute.xlu0 %1102
      %1104 = vrot.lane.b32.xlu0 %v999, 1
      %v1105 = vpop.permute.xlu0 %1104
      %v1106 = vsel %vm254, %v1103, %v1105
      %1107 = vrot.lane.b32.xlu0 %v896, 8
      %v1108 = vpop.permute.xlu0 %1107
      %1109 = vrot.lane.b32.xlu0 %v897, 8
      %v1110 = vpop.permute.xlu0 %1109
      %v1111 = vsel %vm292, %v1108, %v1110
      %1112 = vrot.lane.b32.xlu0 %v790, 9
      %v1113 = vpop.permute.xlu0 %1112
      %1114 = vrot.lane.b32.xlu0 %v791, 9
      %v1115 = vpop.permute.xlu0 %1114
      %v1116 = vsel %vm652, %v1113, %v1115
      %v1119 = vsel %vm569, %v1100, %v1103
      %v1122 = vsel %vm569, %v1101, %v1106
      %v1125 = vsel %vm569, %v1108, %v1113
      %v1128 = vsel %vm569, %v1111, %v1116
      %s1129 = scalar_lea.vmem %s2, 6
      %v1130 = vld [vmem:[%s1129] sm:$0x3]
      %1135 = vrot.lane.b32.xlu0 %v1119, 110
      %v1136 = vpop.permute.xlu0 %1135
      %1137 = vrot.lane.b32.xlu0 %v1122, 110
      %v1138 = vpop.permute.xlu0 %1137
      %1139 = vrot.lane.b32.xlu0 %v1125, 110
      %v1140 = vpop.permute.xlu0 %1139
      %1141 = vrot.lane.b32.xlu0 %v1128, 110
      %v1142 = vpop.permute.xlu0 %1141
      %v1143 = vsel %vm563, %v1136, %v1138
      %v1144 = vsel %vm563, %v1140, %v1142
      %v1148 = vsel %vm845, %v1130, 0
      %1150 = vmatprep.subr.bf16.mxu0 0
      %1151 = vmatpush1.bf16.msra.mxu0 0
      %1152 = vmatprep.subr.bf16.mxu0 0
      %1153 = vmatpush1.bf16.msra.mxu0 0
      %1154 = vmatprep.subr.bf16.mxu0 0
      %1155 = vmatpush1.bf16.msra.mxu0 0
      %1156 = vmatprep.subr.bf16.mxu0 0
      %1157 = vmatpush1.bf16.msra.mxu0 0
      %1158 = vmatprep.subr.bf16.mxu0 0
      %1159 = vmatpush1.bf16.msra.mxu0 0
      %1160 = vmatprep.subr.bf16.mxu0 0
      %1161 = vmatpush1.bf16.msra.mxu0 0
      %1162 = vmatprep.subr.bf16.mxu0 0
      %1163 = vmatpush1.bf16.msra.mxu0 %v1144
      %1164 = vmatprep.subr.bf16.mxu0 0
      %1165 = vmatpush1.bf16.msra.mxu0 %v1143
      %1166 = vmatprep.subr.bf16.mxu0 0
      %1167 = vmatpush2.bf16.msra.mxu0 0
      %1168 = vmatprep.subr.bf16.mxu0 0
      %1169 = vmatpush2.bf16.msra.mxu0 0
      %1170 = vmatprep.subr.bf16.mxu0 0
      %1171 = vmatpush2.bf16.msra.mxu0 0
      %1172 = vmatprep.subr.bf16.mxu0 0
      %1173 = vmatpush2.bf16.msra.mxu0 0
      %1174 = vmatprep.subr.bf16.mxu0 0
      %1175 = vmatpush2.bf16.msra.mxu0 0
      %1176 = vmatprep.subr.bf16.mxu0 0
      %1177 = vmatpush2.bf16.msra.mxu0 0
      %1178 = vmatprep.subr.bf16.mxu0 0
      %1179 = vmatpush2.bf16.msra.mxu0 0
      %1180 = vmatprep.subr.bf16.mxu0 0
      %1181 = vmatpush2.bf16.msra.mxu0 0
      %1182 = vmatprep.mubr.bf16.mxu0 0
      %1183 = vmatmul.mubr.bf16.gmra.mxu0 %v1148
      %v1184 = vpop.f32.mrf.mxu0
      %v1185 = vadd.f32 0.0, %v1184
      %v1186 = vpop.f32.mrf.mxu0
      %v1187 = vpop.f32.mrf.mxu0
      %v1188 = vpop.f32.mrf.mxu0
      %1189 = vdwg.mxu0
      %1190 = vst [vmem:[%s224 + $0xc] sm:$0xf] %v1185
      %v1191 = vadd.f32 %v1094, %v1185
      %v1192 = vmul.f32 %v1185, %v1185
      %v1193 = vadd.f32 %v1096, %v1192
      %v1194 = vld [vmem:[%s4] sm:$0x1]
      %v1195 = vlaneseq
      %v1196 = vshrl.u32 %v1195, 7
      %v1197 = vsub.s32 0, %v1196
      %v1198 = vrot.slane %v1194, %v1197
      %v1199 = vmul.f32 %v1191, %v1198
      %v1200 = vsel %vm569, %v1199, 0.0
      %1201 = vadd.xlane.f32.xlu0 %v1200
      %v1202 = vpop.xlane.xlu0 %1201
      %v1203 = vmul.f32 %v1202, 0.00390625
      %v1204 = vmul.f32 %v1193, %v1198
      %v1205 = vsel %vm569, %v1204, 0.0
      %1206 = vadd.xlane.f32.xlu0 %v1205
      %v1207 = vpop.xlane.xlu0 %1206
      %v1208 = vmul.f32 %v1207, 0.00390625
      %v1209 = vmul.f32 %v1203, %v1203
      %v1210 = vsub.f32 %v1208, %v1209
      %v1211 = vadd.f32 %v1210, 1e-05
      %v1212 = vrsqrt.pop %v1211
      %v1213 = vmul.f32 %v1203, %v1198
      %v1214 = vadd.f32 %v1213, 0.0
      %v1215 = vmul.f32 %v1212, %v1198
      %v1216 = vadd.f32 %v1215, 0.0
      %v1217 = vld [vmem:[%s4 + $0x1] sm:$0x1]
      %v1218 = vlaneseq
      %v1219 = vshrl.u32 %v1218, 7
      %v1220 = vsub.s32 0, %v1219
      %v1221 = vrot.slane %v1217, %v1220
      %v1222 = vmul.f32 %v1191, %v1221
      %v1223 = vsel %vm569, %v1222, 0.0
      %1224 = vadd.xlane.f32.xlu0 %v1223
      %v1225 = vpop.xlane.xlu0 %1224
      %v1226 = vmul.f32 %v1225, 0.00390625
      %v1227 = vmul.f32 %v1193, %v1221
      %v1228 = vsel %vm569, %v1227, 0.0
      %1229 = vadd.xlane.f32.xlu0 %v1228
      %v1230 = vpop.xlane.xlu0 %1229
      %v1231 = vmul.f32 %v1230, 0.00390625
      %v1232 = vmul.f32 %v1226, %v1226
      %v1233 = vsub.f32 %v1231, %v1232
      %v1234 = vadd.f32 %v1233, 1e-05
      %v1235 = vrsqrt.pop %v1234
      %v1236 = vmul.f32 %v1226, %v1221
      %v1237 = vadd.f32 %v1214, %v1236
      %v1238 = vmul.f32 %v1235, %v1221
      %v1239 = vadd.f32 %v1216, %v1238
      %v1240 = vld [vmem:[%s224] sm:$0xff]
      %v1241 = vld [vmem:[%s224 + $0x8] sm:$0xff]
      %v1243 = vrot.slane %v1237, 4
      %v1245 = vsel %vm569, %v1237, %v1243
      %v1246 = vsub.f32 %v1240, %v1245
      %v1247 = vsub.f32 %v1241, %v1245
      %v1249 = vrot.slane %v1239, 4
      %v1251 = vsel %vm569, %v1239, %v1249
      %v1252 = vmul.f32 %v1246, %v1251
      %v1253 = vmul.f32 %v1247, %v1251
      %1254 = vst [vmem:[%s224] sm:$0xff] %v1252
      %1255 = vst [vmem:[%s224 + $0x8] sm:$0xff] %v1253
      %p1256 = scmp.lt.s32.totalorder %s16, 1
      %s1257 = scalar_select %p1256, %s16, 1
      %s1258 = smul.addr %s1257, 2
      %s1259 = smul.addr %s1258, 8
      %s1260 = scalar_lea.vmem %s5, %s1259
      // Predicated region
      $region41: #{unet_skip_innermost.1} parent=39 // pred_check
        %p1261 = pneg %p144
      $region42: #{unet_skip_innermost.1} parent=39 // pred_check_branch
        %1263 = sbr.rel (%p1261) target = $region44
      $region43: #{unet_skip_innermost.1} parent=39 // pred_region
        _
      $region44: #{unet_skip_innermost.1} parent=39 // pred_fallthru
        _
    $region40: #{unet_skip_innermost.1} parent=5 // pred_fallthru
      _
    %p1264 = scmp.le.s32.totalorder 2, %s11
    // Predicated region
    $region45: #{unet_skip_innermost.1} parent=5 // pred_check
      %p1265 = pneg %p1264
    $region46: #{unet_skip_innermost.1} parent=5 // pred_check_branch
      %1267 = sbr.rel (%p1265) target = $region48
    $region47: #{unet_skip_innermost.1} parent=5 // pred_region
      %s1268 = ssub.s32 %s11, 2
      // Predicated region
      $region49: #{unet_skip_innermost.1} parent=47 // pred_check
        %p1269 = pneg %p150
      $region50: #{unet_skip_innermost.1} parent=47 // pred_check_branch
        %1271 = sbr.rel (%p1269) target = $region52
      $region51: #{unet_skip_innermost.1} parent=47 // pred_region
        %p1272 = scmp.lt.s32.totalorder %s17, 1
        %s1273 = scalar_select %p1272, %s17, 1
        %s1274 = smul.addr %s1273, 2
        %s1275 = smul.addr %s1274, 8
        %s1276 = scalar_lea.vmem %s5, %s1275
      $region52: #{unet_skip_innermost.1} parent=47 // pred_fallthru
        _
    $region48: #{unet_skip_innermost.1} parent=5 // pred_fallthru
      _
  $region6: #{unet_skip_innermost.1} parent=0 // loop_footer
    %s15 = sadd.s32 1, %s11
  $region7: #{unet_skip_innermost.1} parent=0 // loop_footer_branch
    %10 = sbr.rel target = $region3
  $region8: #{unet_skip_innermost.1} parent=0 // loop_exit
    _

</llo_original>
